<compile_context>
chip_gen: v7x
topology: tpu7x:2x2x1
jax: 0.10.0
libtpu: 0.0.40
codegen_flags: <defaults>
</compile_context>

<pallas_src>
import functools

import jax
import jax.numpy as jnp
from jax.experimental import pallas as pl
from jax.experimental.pallas import tpu as pltpu

# ------------------------- problem sizes (small, synthetic) -------------------------
B = 2            # batch
T = 8            # sequence length
C = 32           # n_embeddings
H = 4            # num_heads
D = 16           # head_size
BLOCK_SIZE = 8   # block_size (== T here; scale is block_size**-0.5, as in the reference)
V = 32           # vocab_size (global in the original script)

LANE = 128       # TPU lane width -- output last dim is padded to a multiple of this


def _mha_kernel(x_ref, wqkv_ref, wo_ref, out_ref, *,
                batch_block, seq_len, num_heads, head_size):
    """One grid step == `batch_block` batch elements, all heads batched.

    x_ref    : (batch_block*T, C)      bf16
    wqkv_ref : (C, 3*H*D)              bf16  (q columns pre-scaled by block_size**-0.5)
    wo_ref   : (H*D, V_pad)            bf16  (zero-padded to a lane-dense width)
    out_ref  : (batch_block*T, V_pad)  f32
    """
    bb, t, h, d = batch_block, seq_len, num_heads, head_size
    hd = h * d

    # --- fused QKV projection: one MXU matmul, bf16 operands, f32 accumulation ---
    qkv = jnp.dot(x_ref[...], wqkv_ref[...],
                  preferred_element_type=jnp.float32)            # (bb*t, 3*hd) f32

    # Layout shuffle (done once, in f32): columns are (qkv, head, d)-major, so
    # reshape + one swapaxes puts heads into the batch dimension for a single
    # head-batched attention contraction.
    qkv = qkv.reshape(bb, t, 3 * h, d)
    qkv = jnp.swapaxes(qkv, 1, 2).reshape(bb, 3, h, t, d)        # (bb, 3, h, t, d)

    # bf16 at the MXU boundary only (f32 accumulation below); softmax math stays f32.
    q = qkv[:, 0].reshape(bb * h, t, d).astype(jnp.bfloat16)
    k = qkv[:, 1].reshape(bb * h, t, d).astype(jnp.bfloat16)
    v = qkv[:, 2].reshape(bb * h, t, d).astype(jnp.bfloat16)

    # additive causal mask, built once for all (bb*h) attention maps
    row = jax.lax.broadcasted_iota(jnp.int32, (t, t), 0)
    col = jax.lax.broadcasted_iota(jnp.int32, (t, t), 1)
    mask = jnp.where(col <= row, 0.0, -1e30).astype(jnp.float32)  # (t, t)

    # --- single head-batched QK^T (bf16 operands, f32 accumulation) ---
    aff = jnp.einsum('ztd,zsd->zts', q, k,
                     preferred_element_type=jnp.float32)          # (bb*h, t, t) f32
    aff = aff + mask[None, :, :]

    # numerically-stable softmax in f32 (VPU/EUP); reciprocal on the idle EUP.
    aff = aff - aff.max(axis=-1, keepdims=True)
    p = jnp.exp(aff)
    wei = p * pl.reciprocal(p.sum(axis=-1, keepdims=True), approx=True)

    # --- single head-batched PV matmul (bf16 operands, f32 accumulation) ---
    attn = jnp.einsum('zts,zsd->ztd', wei.astype(jnp.bfloat16), v,
                      preferred_element_type=jnp.float32)         # (bb*h, t, d) f32

    # heads back into the lane dim (head-major columns, matching Wo's row order),
    # then ONE (bb*T, H*D) @ (H*D, V_pad) output projection (lane-dense store).
    cat = jnp.swapaxes(attn.reshape(bb, h, t, d), 1, 2).reshape(bb * t, hd)
    out_ref[...] = jnp.dot(cat.astype(jnp.bfloat16), wo_ref[...],
                           preferred_element_type=jnp.float32)


def multi_head_attention(x, wq, wk, wv, wo, *, block_size=BLOCK_SIZE):
    """x: (B,T,C), wq/wk/wv: (H,C,D), wo: (H*D, V) -> (B,T,V)."""
    b, t, c = x.shape
    h, _, d = wq.shape
    hd = h * d
    v_dim = wo.shape[1]
    v_pad = ((v_dim + LANE - 1) // LANE) * LANE

    # ---- weight layout plumbing (wrapper side, plain XLA, not in-kernel) ----
    # (H, C, D) -> (C, H*D) head-major columns; fold the attention scale into Wq.
    scale = block_size ** (-0.5)
    wq_f = jnp.transpose(wq, (1, 0, 2)).reshape(c, hd) * scale
    wk_f = jnp.transpose(wk, (1, 0, 2)).reshape(c, hd)
    wv_f = jnp.transpose(wv, (1, 0, 2)).reshape(c, hd)
    w_qkv = jnp.concatenate([wq_f, wk_f, wv_f], axis=1)           # (C, 3*H*D)
    wo_p = jnp.pad(wo, ((0, 0), (0, v_pad - v_dim)))              # (H*D, V_pad)

    # bf16 MXU inputs, f32 accumulation (MXU peak on v6e/v7x; also fine on v5e).
    x2 = x.reshape(b * t, c).astype(jnp.bfloat16)
    w_qkv = w_qkv.astype(jnp.bfloat16)
    wo_p = wo_p.astype(jnp.bfloat16)

    # Grid strategy: at small B*T the kernel is overhead-bound -> a single grid
    # step over the whole (flattened) batch, no per-core split.  Only when B*T
    # is large do we tile over batch blocks, keeping >=256 rows per step so the
    # MXU M-dimension stays filled (and double-buffered blocks stay well under
    # v7x's 64 MiB VMEM).
    bb = b
    if b * t >= 512:
        for cand in range(1, b + 1):
            if b % cand == 0 and cand * t >= 256:
                bb = cand
                break
    nb = b // bb

    kernel = functools.partial(_mha_kernel, batch_block=bb, seq_len=t,
                               num_heads=h, head_size=d)

    out = pl.pallas_call(
        kernel,
        out_shape=jax.ShapeDtypeStruct((b * t, v_pad), jnp.float32),
        grid_spec=pltpu.PrefetchScalarGridSpec(
            num_scalar_prefetch=0,
            grid=(nb,),
            in_specs=[
                pl.BlockSpec((bb * t, c), lambda i: (i, 0)),      # x (batch-flattened)
                pl.BlockSpec((c, 3 * hd), lambda i: (0, 0)),      # fused Wqkv (constant)
                pl.BlockSpec((hd, v_pad), lambda i: (0, 0)),      # padded Wo (constant)
            ],
            out_specs=pl.BlockSpec((bb * t, v_pad), lambda i: (i, 0)),
        ),
        compiler_params=pltpu.CompilerParams(
            dimension_semantics=("parallel",)),
    )(x2, w_qkv, wo_p)

    return out.reshape(b, t, v_pad)[:, :, :v_dim]


def _reference(x, wq, wk, wv, wo):
    """Pure-JAX f32 reference mirroring the PyTorch forward."""
    outs = []
    scale = BLOCK_SIZE ** (-0.5)
    t = x.shape[1]
    tril = jnp.tril(jnp.ones((BLOCK_SIZE, BLOCK_SIZE)))[:t, :t]
    for h in range(wq.shape[0]):
        q = x @ wq[h]
        k = x @ wk[h]
        v = x @ wv[h]
        aff = (q @ jnp.swapaxes(k, -2, -1)) * scale
        aff = jnp.where(tril == 0, -jnp.inf, aff)
        wei = jax.nn.softmax(aff, axis=-1)
        outs.append(wei @ v)
    cat = jnp.concatenate(outs, axis=-1)
    return cat @ wo


if __name__ == "__main__":
    key = jax.random.PRNGKey(0)
    kx, kq, kk, kv, ko = jax.random.split(key, 5)

    x = jax.random.normal(kx, (B, T, C), dtype=jnp.float32)
    # deterministic synthetic parameters (stored as (in, out), Linear(bias=False))
    wq = jax.random.normal(kq, (H, C, D), dtype=jnp.float32) * 0.1
    wk = jax.random.normal(kk, (H, C, D), dtype=jnp.float32) * 0.1
    wv = jax.random.normal(kv, (H, C, D), dtype=jnp.float32) * 0.1
    wo = jax.random.normal(ko, (H * D, V), dtype=jnp.float32) * 0.1

    out = multi_head_attention(x, wq, wk, wv, wo)
    out = jax.block_until_ready(out)

    ref = _reference(x, wq, wk, wv, wo)
    assert out.shape == (B, T, V)
    # bf16 MXU inputs (QKV, QK^T, PV, output projection) -> loosened tolerance
    # vs the f32 reference; approx reciprocal adds ~1e-3 relative softmax error.
    assert jnp.allclose(out, ref, atol=5e-2, rtol=5e-2), "mismatch vs reference"

    print("KERNEL_OK")
</pallas_src>

<mosaic_0001>
module attributes {stable_mosaic.version = 11 : i64} {
  func.func @_mha_kernel(%arg0: i32, %arg1: memref<16x32xbf16, #tpu.memory_space<vmem>>, %arg2: memref<32x192xbf16, #tpu.memory_space<vmem>>, %arg3: memref<64x128xbf16, #tpu.memory_space<vmem>>, %arg4: memref<16x128xf32, #tpu.memory_space<vmem>>) attributes {dimension_semantics = [#tpu.dimension_semantics<parallel>], iteration_bounds = array<i64: 1>, scalar_prefetch = 0 : i64, scratch_operands = 0 : i64, tpu.core_type = #tpu.core_type<tc>, window_params = [{transform_indices = @transform_0, window_bounds = array<i64: 16, 32>}, {pipeline_mode = #tpu.pipeline_mode<synchronous>, transform_indices = @transform_1, window_bounds = array<i64: 32, 192>}, {pipeline_mode = #tpu.pipeline_mode<synchronous>, transform_indices = @transform_2, window_bounds = array<i64: 64, 128>}, {transform_indices = @transform_3, window_bounds = array<i64: 16, 128>}]} {
    %c0 = arith.constant 0 : index
    %c0_0 = arith.constant 0 : index
    %0 = vector.load %arg1[%c0, %c0_0] : memref<16x32xbf16, #tpu.memory_space<vmem>>, vector<16x32xbf16>
    %c0_1 = arith.constant 0 : index
    %c0_2 = arith.constant 0 : index
    %1 = vector.load %arg2[%c0_1, %c0_2] : memref<32x192xbf16, #tpu.memory_space<vmem>>, vector<32x192xbf16>
    %cst = arith.constant dense<0.000000e+00> : vector<16x192xf32>
    %2 = tpu.matmul %0, %1, %cst {dimension_numbers = #tpu.dot_dimension_numbers<[1], [0], [0], [1], [0, 0, 1, 1], [], []>} : vector<16x32xbf16>, vector<32x192xbf16>, vector<16x192xf32> -> vector<16x192xf32>
    %3 = vector.shape_cast %2 : vector<16x192xf32> to vector<2x8x12x16xf32>
    %4 = tpu.transpose %3, [0, 2, 1, 3] : vector<2x8x12x16xf32> -> vector<2x12x8x16xf32>
    %5 = vector.shape_cast %4 : vector<2x12x8x16xf32> to vector<2x3x4x8x16xf32>
    %6 = vector.extract_strided_slice %5 {offsets = [0, 0, 0, 0, 0], sizes = [2, 1, 4, 8, 16], strides = [1, 1, 1, 1, 1]} : vector<2x3x4x8x16xf32> to vector<2x1x4x8x16xf32>
    %7 = vector.shape_cast %6 : vector<2x1x4x8x16xf32> to vector<2x4x8x16xf32>
    %8 = vector.shape_cast %7 : vector<2x4x8x16xf32> to vector<8x8x16xf32>
    %9 = arith.truncf %8 : vector<8x8x16xf32> to vector<8x8x16xbf16>
    %10 = vector.extract_strided_slice %5 {offsets = [0, 1, 0, 0, 0], sizes = [2, 1, 4, 8, 16], strides = [1, 1, 1, 1, 1]} : vector<2x3x4x8x16xf32> to vector<2x1x4x8x16xf32>
    %11 = vector.shape_cast %10 : vector<2x1x4x8x16xf32> to vector<2x4x8x16xf32>
    %12 = vector.shape_cast %11 : vector<2x4x8x16xf32> to vector<8x8x16xf32>
    %13 = arith.truncf %12 : vector<8x8x16xf32> to vector<8x8x16xbf16>
    %14 = vector.extract_strided_slice %5 {offsets = [0, 2, 0, 0, 0], sizes = [2, 1, 4, 8, 16], strides = [1, 1, 1, 1, 1]} : vector<2x3x4x8x16xf32> to vector<2x1x4x8x16xf32>
    %15 = vector.shape_cast %14 : vector<2x1x4x8x16xf32> to vector<2x4x8x16xf32>
    %16 = vector.shape_cast %15 : vector<2x4x8x16xf32> to vector<8x8x16xf32>
    %17 = arith.truncf %16 : vector<8x8x16xf32> to vector<8x8x16xbf16>
    %18 = tpu.iota {dimensions = array<i32: 0>} : vector<8x8xi32>
    %19 = tpu.iota {dimensions = array<i32: 1>} : vector<8x8xi32>
    %20 = arith.cmpi sle, %19, %18 : vector<8x8xi32>
    %cst_3 = arith.constant 0.000000e+00 : f32
    %cst_4 = arith.constant -1.000000e+30 : f32
    %21 = vector.broadcast %cst_3 : f32 to vector<8x8xf32>
    %22 = vector.broadcast %cst_4 : f32 to vector<8x8xf32>
    %23 = arith.select %20, %21, %22 : vector<8x8xi1>, vector<8x8xf32>
    "tpu.trace_start"() <{level = 10 : i32, message = "ztd,zsd->zts"}> : () -> ()
    %cst_5 = arith.constant dense<0.000000e+00> : vector<8x8x8xf32>
    %24 = tpu.matmul %9, %13, %cst_5 {dimension_numbers = #tpu.dot_dimension_numbers<[2], [2], [1], [1], [0, 0, 0, 1, 1, 1], [0], [0]>} : vector<8x8x16xbf16>, vector<8x8x16xbf16>, vector<8x8x8xf32> -> vector<8x8x8xf32>
    "tpu.trace_stop"() : () -> ()
    %25 = vector.shape_cast %23 : vector<8x8xf32> to vector<1x8x8xf32>
    %26 = vector.broadcast %25 : vector<1x8x8xf32> to vector<8x8x8xf32>
    %27 = arith.addf %24, %26 : vector<8x8x8xf32>
    %cst_6 = arith.constant dense<0xFF800000> : vector<8x8xf32>
    %28 = vector.multi_reduction <maximumf>, %27, %cst_6 [2] : vector<8x8x8xf32> to vector<8x8xf32>
    %29 = vector.shape_cast %28 : vector<8x8xf32> to vector<8x8x1xf32>
    %30 = vector.broadcast %29 : vector<8x8x1xf32> to vector<8x8x8xf32>
    %31 = arith.subf %27, %30 : vector<8x8x8xf32>
    %32 = math.exp %31 : vector<8x8x8xf32>
    %cst_7 = arith.constant dense<0.000000e+00> : vector<8x8xf32>
    %33 = vector.multi_reduction <add>, %32, %cst_7 [2] : vector<8x8x8xf32> to vector<8x8xf32>
    %34 = vector.shape_cast %33 : vector<8x8xf32> to vector<8x8x1xf32>
    %35 = tpu.reciprocal %34 {approx = true} : vector<8x8x1xf32> -> vector<8x8x1xf32>
    %36 = vector.broadcast %35 : vector<8x8x1xf32> to vector<8x8x8xf32>
    %37 = arith.mulf %32, %36 : vector<8x8x8xf32>
    %38 = arith.truncf %37 : vector<8x8x8xf32> to vector<8x8x8xbf16>
    "tpu.trace_start"() <{level = 10 : i32, message = "zts,zsd->ztd"}> : () -> ()
    %cst_8 = arith.constant dense<0.000000e+00> : vector<8x8x16xf32>
    %39 = tpu.matmul %38, %17, %cst_8 {dimension_numbers = #tpu.dot_dimension_numbers<[2], [1], [1], [2], [0, 0, 0, 1, 1, 2], [0], [0]>} : vector<8x8x8xbf16>, vector<8x8x16xbf16>, vector<8x8x16xf32> -> vector<8x8x16xf32>
    "tpu.trace_stop"() : () -> ()
    %40 = vector.shape_cast %39 : vector<8x8x16xf32> to vector<2x4x8x16xf32>
    %41 = tpu.transpose %40, [0, 2, 1, 3] : vector<2x4x8x16xf32> -> vector<2x8x4x16xf32>
    %42 = vector.shape_cast %41 : vector<2x8x4x16xf32> to vector<16x64xf32>
    %43 = arith.truncf %42 : vector<16x64xf32> to vector<16x64xbf16>
    %c0_9 = arith.constant 0 : index
    %c0_10 = arith.constant 0 : index
    %44 = vector.load %arg3[%c0_9, %c0_10] : memref<64x128xbf16, #tpu.memory_space<vmem>>, vector<64x128xbf16>
    %cst_11 = arith.constant dense<0.000000e+00> : vector<16x128xf32>
    %45 = tpu.matmul %43, %44, %cst_11 {dimension_numbers = #tpu.dot_dimension_numbers<[1], [0], [0], [1], [0, 0, 1, 1], [], []>} : vector<16x64xbf16>, vector<64x128xbf16>, vector<16x128xf32> -> vector<16x128xf32>
    %c0_12 = arith.constant 0 : index
    %c0_13 = arith.constant 0 : index
    %46 = vector.load %arg4[%c0_12, %c0_13] : memref<16x128xf32, #tpu.memory_space<vmem>>, vector<16x128xf32>
    tpu.vector_store %arg4[%c0_12, %c0_13], %45 {strides = array<i32>} : memref<16x128xf32, #tpu.memory_space<vmem>>, vector<16x128xf32>,
    return
  }
  func.func @transform_0(%arg0: i32) -> (i32, i32) {
    %c0_i32 = arith.constant 0 : i32
    %c0_i32_0 = arith.constant 0 : i32
    return %arg0, %c0_i32 : i32, i32
  }
  func.func @transform_1(%arg0: i32) -> (i32, i32) {
    %c0_i32 = arith.constant 0 : i32
    %c0_i32_0 = arith.constant 0 : i32
    %c0_i32_1 = arith.constant 0 : i32
    return %c0_i32, %c0_i32_0 : i32, i32
  }
  func.func @transform_2(%arg0: i32) -> (i32, i32) {
    %c0_i32 = arith.constant 0 : i32
    %c0_i32_0 = arith.constant 0 : i32
    %c0_i32_1 = arith.constant 0 : i32
    return %c0_i32, %c0_i32_0 : i32, i32
  }
  func.func @transform_3(%arg0: i32) -> (i32, i32) {
    %c0_i32 = arith.constant 0 : i32
    %c0_i32_0 = arith.constant 0 : i32
    return %arg0, %c0_i32 : i32, i32
  }
}

</mosaic_0001>

<llo_original>
// kernel: tpu_custom_call.1
$region0: #{tpu_custom_call.1}
  #allocation0 [shape = 'u32[]', space=smem, size = 0x4, offset = 0x4, fixed_abs, tag = 'smem constant byte address 0x4 - core index']
  #allocation1 [shape = 'u32[144,128]{1,0:T(1,128)}', space=vmem, size = 0x12000, scoped, tag = 'internal scratch']
  %s0 = inlined_call_operand.hbm [shape: bf16[16,32], index: 0, kind: input, shape index: {}]
  %s1 = inlined_call_operand.hbm [shape: bf16[32,192], index: 1, kind: input, shape index: {}]
  %s2 = inlined_call_operand.hbm [shape: bf16[64,128], index: 2, kind: input, shape index: {}]
  %s3 = inlined_call_operand.hbm [shape: f32[16,128], index: 3, kind: output, shape index: {}]
  %s4 = sld [smem:[#allocation0]]
  $region34: #{tpu_custom_call.1} parent=0
    _
  %s6 = ssub.s32 1, %s4
  %s7 = scalar_select 0, %s6, %s4
  $region1: #{tpu_custom_call.1} parent=0
    #allocation2 [shape = 'u8[4096]{0}', space=vmem, size = 0x1000, scoped, tag = 'input window, operand 0, single buffered']
    #allocation3 [shape = 's32[1]{0}', space=sflag, size = 0x4, scoped, tag = 'scoped memory for tpu_custom_call.1']
    #allocation4 [shape = 's32[1]{0}', space=sflag, size = 0x4, scoped, tag = 'scoped memory for tpu_custom_call.1']
    #allocation5 [shape = 'u8[16384]{0}', space=vmem, size = 0x4000, scoped, tag = 'input window, operand 1, single buffered']
    #allocation6 [shape = 's32[1]{0}', space=sflag, size = 0x4, scoped, tag = 'scoped memory for tpu_custom_call.1']
    #allocation7 [shape = 'u8[16384]{0}', space=vmem, size = 0x4000, scoped, tag = 'input window, operand 2, single buffered']
    #allocation8 [shape = 'u8[8192]{0}', space=vmem, size = 0x2000, scoped, tag = 'output window, operand 0, single buffered']
    %8 = vsyncpa [#allocation3], 0
    %9 = vsyncpa [#allocation6], 0
    %10 = vsyncpa [#allocation4], 0
    // Predicated region
    $region2: #{tpu_custom_call.1} parent=1 // pred_check
      _
    $region3: #{tpu_custom_call.1} parent=1 // pred_check_branch
      %12 = sbr.rel (0) target = $region5
    $region4: #{tpu_custom_call.1} parent=1 // pred_region
      %s14 = ssub.s32 128, 128
      %15 = vsyncadd [#allocation3], %s14
      %s16 = sshll.u32 [#allocation2], 4
      %s17 = int_to_ptr.vmem [resolvable:$true] %s16
      %22 = dma.hbm_to_vmem [thread:$0]  %s0, 128, %s17, [#allocation3], 64, 64, 4
    $region5: #{tpu_custom_call.1} parent=1 // pred_fallthru
      _
    // Predicated region
    $region6: #{tpu_custom_call.1} parent=1 // pred_check
      _
    $region7: #{tpu_custom_call.1} parent=1 // pred_check_branch
      %24 = sbr.rel (0) target = $region9
    $region8: #{tpu_custom_call.1} parent=1 // pred_region
      %s26 = ssub.s32 512, 512
      %27 = vsyncadd [#allocation6], %s26
      %s28 = sshll.u32 [#allocation5], 4
      %s29 = int_to_ptr.vmem [resolvable:$true] %s28
      %34 = dma.hbm_to_vmem [thread:$0]  %s1, 512, %s29, [#allocation6], 128, 128, 8
    $region9: #{tpu_custom_call.1} parent=1 // pred_fallthru
      _
    // Predicated region
    $region10: #{tpu_custom_call.1} parent=1 // pred_check
      _
    $region11: #{tpu_custom_call.1} parent=1 // pred_check_branch
      %36 = sbr.rel (0) target = $region13
    $region12: #{tpu_custom_call.1} parent=1 // pred_region
      %s38 = ssub.s32 512, 512
      %39 = vsyncadd [#allocation6], %s38
      %s40 = sshll.u32 [#allocation7], 4
      %s41 = int_to_ptr.vmem [resolvable:$true] %s40
      %46 = dma.hbm_to_vmem [thread:$0]  %s2, 512, %s41, [#allocation6], 64, 64, 4
    $region13: #{tpu_custom_call.1} parent=1 // pred_fallthru
      _
    // Predicated region
    $region14: #{tpu_custom_call.1} parent=1 // pred_check
      _
    $region15: #{tpu_custom_call.1} parent=1 // pred_check_branch
      %48 = sbr.rel (0) target = $region17
    $region16: #{tpu_custom_call.1} parent=1 // pred_region
      %49 = dma.done [#allocation3], 128
    $region17: #{tpu_custom_call.1} parent=1 // pred_fallthru
      _
    // Predicated region
    $region18: #{tpu_custom_call.1} parent=1 // pred_check
      _
    $region19: #{tpu_custom_call.1} parent=1 // pred_check_branch
      %51 = sbr.rel (0) target = $region21
    $region20: #{tpu_custom_call.1} parent=1 // pred_region
      %52 = dma.done [#allocation6], 512
    $region21: #{tpu_custom_call.1} parent=1 // pred_fallthru
      _
    // Predicated region
    $region22: #{tpu_custom_call.1} parent=1 // pred_check
      _
    $region23: #{tpu_custom_call.1} parent=1 // pred_check_branch
      %54 = sbr.rel (0) target = $region25
    $region24: #{tpu_custom_call.1} parent=1 // pred_region
      %55 = dma.done [#allocation6], 512
    $region25: #{tpu_custom_call.1} parent=1 // pred_fallthru
      _
    %v57 = vld [vmem:[#allocation2] sm:$0xf]
    %v58 = vld [vmem:[#allocation2 + $0x4] sm:$0xf]
    %v59 = vld [vmem:[#allocation5] sm:$0xff]
    %v60 = vld [vmem:[#allocation5 + $0x8] sm:$0xff]
    %v61 = vld [vmem:[#allocation5 + $0x10] sm:$0xff]
    %v62 = vld [vmem:[#allocation5 + $0x18] sm:$0xff]
    %v65 = vunpack.c.l.b16 %v57
    %v66 = vunpack.c.l.b16 %v58
    %v67 = vpack.c.b16 %v66, %v65
    %v72 = vunpack.c.l.b16 %v59
    %v73 = vunpack.c.h.b16 %v59
    %v74 = vunpack.c.l.b16 %v60
    %v75 = vunpack.c.h.b16 %v60
    %v76 = vunpack.c.l.b16 %v61
    %v77 = vunpack.c.h.b16 %v61
    %v78 = vunpack.c.l.b16 %v62
    %v79 = vunpack.c.h.b16 %v62
    %v80 = vpack.c.b16 %v74, %v72
    %v81 = vpack.c.b16 %v75, %v73
    %v82 = vpack.c.b16 %v78, %v76
    %v83 = vpack.c.b16 %v79, %v77
    %vm88 = vcmask 261120
    %v90 = vsel %vm88, %v67, 0
    %92 = vmatprep.subr.bf16.mxu0 %v81
    %93 = vmatpush1.bf16.msra.mxu0 %v80
    %94 = vmatprep.subr.bf16.mxu0 %v83
    %95 = vmatpush1.bf16.msra.mxu0 %v82
    %96 = vmatprep.subr.bf16.mxu0 0
    %97 = vmatpush1.bf16.msra.mxu0 0
    %98 = vmatprep.subr.bf16.mxu0 0
    %99 = vmatpush1.bf16.msra.mxu0 0
    %100 = vmatprep.subr.bf16.mxu0 0
    %101 = vmatpush1.bf16.msra.mxu0 0
    %102 = vmatprep.subr.bf16.mxu0 0
    %103 = vmatpush1.bf16.msra.mxu0 0
    %104 = vmatprep.subr.bf16.mxu0 0
    %105 = vmatpush1.bf16.msra.mxu0 0
    %106 = vmatprep.subr.bf16.mxu0 0
    %107 = vmatpush1.bf16.msra.mxu0 0
    %108 = vmatprep.subr.bf16.mxu0 0
    %109 = vmatpush1.bf16.msra.mxu0 0
    %110 = vmatprep.subr.bf16.mxu0 0
    %111 = vmatpush1.bf16.msra.mxu0 0
    %112 = vmatprep.subr.bf16.mxu0 0
    %113 = vmatpush1.bf16.msra.mxu0 0
    %114 = vmatprep.subr.bf16.mxu0 0
    %115 = vmatpush1.bf16.msra.mxu0 0
    %116 = vmatprep.subr.bf16.mxu0 0
    %117 = vmatpush1.bf16.msra.mxu0 0
    %118 = vmatprep.subr.bf16.mxu0 0
    %119 = vmatpush1.bf16.msra.mxu0 0
    %120 = vmatprep.subr.bf16.mxu0 0
    %121 = vmatpush1.bf16.msra.mxu0 0
    %122 = vmatprep.subr.bf16.mxu0 0
    %123 = vmatpush1.bf16.msra.mxu0 0
    %124 = vmatprep.mubr.bf16.mxu0 0
    %125 = vmatmul.mubr.bf16.gmra.mrb[0].mxu0 %v90
    %v126 = vpop.f32.mrb[0].mxu0
    %v127 = vadd.f32 0.0, %v126
    %v128 = vpop.f32.mrb[0].mxu0
    %v129 = vadd.f32 0.0, %v128
    %v130 = vpop.f32.mrb[0].mxu0
    %v131 = vadd.f32 0.0, %v130
    %v132 = vpop.f32.mrb[0].mxu0
    %v133 = vadd.f32 0.0, %v132
    %134 = vdwg.mxu0
    %137 = vrot.lane.b32.xlu0 %v127, 112
    %v138 = vpop.permute.xlu0 %137
    %139 = vrot.lane.b32.xlu0 %v131, 112
    %v140 = vpop.permute.xlu0 %139
    %143 = vrot.lane.b32.xlu0 %v127, 96
    %v144 = vpop.permute.xlu0 %143
    %145 = vrot.lane.b32.xlu0 %v131, 96
    %v146 = vpop.permute.xlu0 %145
    %149 = vrot.lane.b32.xlu0 %v127, 80
    %v150 = vpop.permute.xlu0 %149
    %151 = vrot.lane.b32.xlu0 %v131, 80
    %v152 = vpop.permute.xlu0 %151
    %155 = vrot.lane.b32.xlu0 %v127, 64
    %v156 = vpop.permute.xlu0 %155
    %157 = vrot.lane.b32.xlu0 %v131, 64
    %v158 = vpop.permute.xlu0 %157
    %161 = vrot.lane.b32.xlu0 %v127, 48
    %v162 = vpop.permute.xlu0 %161
    %163 = vrot.lane.b32.xlu0 %v131, 48
    %v164 = vpop.permute.xlu0 %163
    %167 = vrot.lane.b32.xlu0 %v127, 32
    %v168 = vpop.permute.xlu0 %167
    %169 = vrot.lane.b32.xlu0 %v131, 32
    %v170 = vpop.permute.xlu0 %169
    %173 = vrot.lane.b32.xlu0 %v127, 16
    %v174 = vpop.permute.xlu0 %173
    %175 = vrot.lane.b32.xlu0 %v131, 16
    %v176 = vpop.permute.xlu0 %175
    %181 = vrot.lane.b32.xlu0 %v129, 112
    %v182 = vpop.permute.xlu0 %181
    %183 = vrot.lane.b32.xlu0 %v133, 112
    %v184 = vpop.permute.xlu0 %183
    %187 = vrot.lane.b32.xlu0 %v129, 96
    %v188 = vpop.permute.xlu0 %187
    %189 = vrot.lane.b32.xlu0 %v133, 96
    %v190 = vpop.permute.xlu0 %189
    %193 = vrot.lane.b32.xlu0 %v129, 80
    %v194 = vpop.permute.xlu0 %193
    %195 = vrot.lane.b32.xlu0 %v133, 80
    %v196 = vpop.permute.xlu0 %195
    %v199 = vcombine.low %v127, %v144
    %v200 = vcombine.high %v127, %v144
    %v202 = vunpack.c.l.s4 1983009808
    %v203 = vunpack.c.0.s8 %v202
    %v204 = vlaneseq
    %v205 = vshrl.u32 %v204, 7
    %v206 = vsub.s32 %v203, %v205
    %v207 = vrot.slane %v199, %v206
    %v209 = vunpack.c.l.s4 1983009808
    %v210 = vunpack.c.0.s8 %v209
    %v211 = vlaneseq
    %v212 = vshrl.u32 %v211, 7
    %v213 = vsub.s32 %v210, %v212
    %v214 = vrot.slane %v200, %v213
    %v215 = vcombine.low %v138, %v150
    %v216 = vcombine.high %v138, %v150
    %v218 = vunpack.c.l.s4 1983009808
    %v219 = vunpack.c.0.s8 %v218
    %v220 = vlaneseq
    %v221 = vshrl.u32 %v220, 7
    %v222 = vsub.s32 %v219, %v221
    %v223 = vrot.slane %v215, %v222
    %v225 = vunpack.c.l.s4 1983009808
    %v226 = vunpack.c.0.s8 %v225
    %v227 = vlaneseq
    %v228 = vshrl.u32 %v227, 7
    %v229 = vsub.s32 %v226, %v228
    %v230 = vrot.slane %v216, %v229
    %v231 = vcombine.low %v156, %v168
    %v232 = vcombine.high %v156, %v168
    %v234 = vunpack.c.l.s4 1983009808
    %v235 = vunpack.c.0.s8 %v234
    %v236 = vlaneseq
    %v237 = vshrl.u32 %v236, 7
    %v238 = vsub.s32 %v235, %v237
    %v239 = vrot.slane %v231, %v238
    %v241 = vunpack.c.l.s4 1983009808
    %v242 = vunpack.c.0.s8 %v241
    %v243 = vlaneseq
    %v244 = vshrl.u32 %v243, 7
    %v245 = vsub.s32 %v242, %v244
    %v246 = vrot.slane %v232, %v245
    %v247 = vcombine.low %v162, %v174
    %v248 = vcombine.high %v162, %v174
    %v250 = vunpack.c.l.s4 1983009808
    %v251 = vunpack.c.0.s8 %v250
    %v252 = vlaneseq
    %v253 = vshrl.u32 %v252, 7
    %v254 = vsub.s32 %v251, %v253
    %v255 = vrot.slane %v247, %v254
    %v257 = vunpack.c.l.s4 1983009808
    %v258 = vunpack.c.0.s8 %v257
    %v259 = vlaneseq
    %v260 = vshrl.u32 %v259, 7
    %v261 = vsub.s32 %v258, %v260
    %v262 = vrot.slane %v248, %v261
    %v263 = vcombine.low %v207, %v223
    %v264 = vcombine.high %v207, %v223
    %v266 = vunpack.c.l.s4 1934713408
    %v267 = vunpack.c.0.s8 %v266
    %v268 = vlaneseq
    %v269 = vshrl.u32 %v268, 7
    %v270 = vsub.s32 %v267, %v269
    %v271 = vrot.slane %v263, %v270
    %v273 = vunpack.c.l.s4 1934713408
    %v274 = vunpack.c.0.s8 %v273
    %v275 = vlaneseq
    %v276 = vshrl.u32 %v275, 7
    %v277 = vsub.s32 %v274, %v276
    %v278 = vrot.slane %v264, %v277
    %v279 = vcombine.low %v214, %v230
    %v280 = vcombine.high %v214, %v230
    %v282 = vunpack.c.l.s4 1934713408
    %v283 = vunpack.c.0.s8 %v282
    %v284 = vlaneseq
    %v285 = vshrl.u32 %v284, 7
    %v286 = vsub.s32 %v283, %v285
    %v287 = vrot.slane %v279, %v286
    %v289 = vunpack.c.l.s4 1934713408
    %v290 = vunpack.c.0.s8 %v289
    %v291 = vlaneseq
    %v292 = vshrl.u32 %v291, 7
    %v293 = vsub.s32 %v290, %v292
    %v294 = vrot.slane %v280, %v293
    %v295 = vcombine.low %v239, %v255
    %v296 = vcombine.high %v239, %v255
    %v298 = vunpack.c.l.s4 1934713408
    %v299 = vunpack.c.0.s8 %v298
    %v300 = vlaneseq
    %v301 = vshrl.u32 %v300, 7
    %v302 = vsub.s32 %v299, %v301
    %v303 = vrot.slane %v295, %v302
    %v305 = vunpack.c.l.s4 1934713408
    %v306 = vunpack.c.0.s8 %v305
    %v307 = vlaneseq
    %v308 = vshrl.u32 %v307, 7
    %v309 = vsub.s32 %v306, %v308
    %v310 = vrot.slane %v296, %v309
    %v311 = vcombine.low %v246, %v262
    %v312 = vcombine.high %v246, %v262
    %v314 = vunpack.c.l.s4 1934713408
    %v315 = vunpack.c.0.s8 %v314
    %v316 = vlaneseq
    %v317 = vshrl.u32 %v316, 7
    %v318 = vsub.s32 %v315, %v317
    %v319 = vrot.slane %v311, %v318
    %v321 = vunpack.c.l.s4 1934713408
    %v322 = vunpack.c.0.s8 %v321
    %v323 = vlaneseq
    %v324 = vshrl.u32 %v323, 7
    %v325 = vsub.s32 %v322, %v324
    %v326 = vrot.slane %v312, %v325
    %v327 = vcombine.low %v271, %v303
    %v328 = vcombine.high %v271, %v303
    %v329 = vcombine.low %v278, %v310
    %v330 = vcombine.high %v278, %v310
    %v331 = vcombine.low %v287, %v319
    %v332 = vcombine.high %v287, %v319
    %v333 = vcombine.low %v294, %v326
    %v334 = vcombine.high %v294, %v326
    %v335 = vcombine.low %v129, %v188
    %v336 = vcombine.high %v129, %v188
    %v338 = vunpack.c.l.s4 1983009808
    %v339 = vunpack.c.0.s8 %v338
    %v340 = vlaneseq
    %v341 = vshrl.u32 %v340, 7
    %v342 = vsub.s32 %v339, %v341
    %v343 = vrot.slane %v335, %v342
    %v345 = vunpack.c.l.s4 1983009808
    %v346 = vunpack.c.0.s8 %v345
    %v347 = vlaneseq
    %v348 = vshrl.u32 %v347, 7
    %v349 = vsub.s32 %v346, %v348
    %v350 = vrot.slane %v336, %v349
    %v351 = vcombine.low %v182, %v194
    %v352 = vcombine.high %v182, %v194
    %v354 = vunpack.c.l.s4 1983009808
    %v355 = vunpack.c.0.s8 %v354
    %v356 = vlaneseq
    %v357 = vshrl.u32 %v356, 7
    %v358 = vsub.s32 %v355, %v357
    %v359 = vrot.slane %v351, %v358
    %v361 = vunpack.c.l.s4 1983009808
    %v362 = vunpack.c.0.s8 %v361
    %v363 = vlaneseq
    %v364 = vshrl.u32 %v363, 7
    %v365 = vsub.s32 %v362, %v364
    %v366 = vrot.slane %v352, %v365
    %v367 = vcombine.low %v343, %v359
    %v368 = vcombine.high %v343, %v359
    %v370 = vunpack.c.l.s4 1934713408
    %v371 = vunpack.c.0.s8 %v370
    %v372 = vlaneseq
    %v373 = vshrl.u32 %v372, 7
    %v374 = vsub.s32 %v371, %v373
    %v375 = vrot.slane %v367, %v374
    %v377 = vunpack.c.l.s4 1934713408
    %v378 = vunpack.c.0.s8 %v377
    %v379 = vlaneseq
    %v380 = vshrl.u32 %v379, 7
    %v381 = vsub.s32 %v378, %v380
    %v382 = vrot.slane %v368, %v381
    %v383 = vcombine.low %v350, %v366
    %v384 = vcombine.high %v350, %v366
    %v386 = vunpack.c.l.s4 1934713408
    %v387 = vunpack.c.0.s8 %v386
    %v388 = vlaneseq
    %v389 = vshrl.u32 %v388, 7
    %v390 = vsub.s32 %v387, %v389
    %v391 = vrot.slane %v383, %v390
    %v393 = vunpack.c.l.s4 1934713408
    %v394 = vunpack.c.0.s8 %v393
    %v395 = vlaneseq
    %v396 = vshrl.u32 %v395, 7
    %v397 = vsub.s32 %v394, %v396
    %v398 = vrot.slane %v384, %v397
    %v399 = vcombine.high %v375, 0.0
    %v400 = vcombine.high %v382, 0.0
    %v401 = vcombine.high %v391, 0.0
    %v402 = vcombine.high %v398, 0.0
    %v403 = vcombine.low %v131, %v146
    %v404 = vcombine.high %v131, %v146
    %v406 = vunpack.c.l.s4 1983009808
    %v407 = vunpack.c.0.s8 %v406
    %v408 = vlaneseq
    %v409 = vshrl.u32 %v408, 7
    %v410 = vsub.s32 %v407, %v409
    %v411 = vrot.slane %v403, %v410
    %v413 = vunpack.c.l.s4 1983009808
    %v414 = vunpack.c.0.s8 %v413
    %v415 = vlaneseq
    %v416 = vshrl.u32 %v415, 7
    %v417 = vsub.s32 %v414, %v416
    %v418 = vrot.slane %v404, %v417
    %v419 = vcombine.low %v140, %v152
    %v420 = vcombine.high %v140, %v152
    %v422 = vunpack.c.l.s4 1983009808
    %v423 = vunpack.c.0.s8 %v422
    %v424 = vlaneseq
    %v425 = vshrl.u32 %v424, 7
    %v426 = vsub.s32 %v423, %v425
    %v427 = vrot.slane %v419, %v426
    %v429 = vunpack.c.l.s4 1983009808
    %v430 = vunpack.c.0.s8 %v429
    %v431 = vlaneseq
    %v432 = vshrl.u32 %v431, 7
    %v433 = vsub.s32 %v430, %v432
    %v434 = vrot.slane %v420, %v433
    %v435 = vcombine.low %v158, %v170
    %v436 = vcombine.high %v158, %v170
    %v438 = vunpack.c.l.s4 1983009808
    %v439 = vunpack.c.0.s8 %v438
    %v440 = vlaneseq
    %v441 = vshrl.u32 %v440, 7
    %v442 = vsub.s32 %v439, %v441
    %v443 = vrot.slane %v435, %v442
    %v445 = vunpack.c.l.s4 1983009808
    %v446 = vunpack.c.0.s8 %v445
    %v447 = vlaneseq
    %v448 = vshrl.u32 %v447, 7
    %v449 = vsub.s32 %v446, %v448
    %v450 = vrot.slane %v436, %v449
    %v451 = vcombine.low %v164, %v176
    %v452 = vcombine.high %v164, %v176
    %v454 = vunpack.c.l.s4 1983009808
    %v455 = vunpack.c.0.s8 %v454
    %v456 = vlaneseq
    %v457 = vshrl.u32 %v456, 7
    %v458 = vsub.s32 %v455, %v457
    %v459 = vrot.slane %v451, %v458
    %v461 = vunpack.c.l.s4 1983009808
    %v462 = vunpack.c.0.s8 %v461
    %v463 = vlaneseq
    %v464 = vshrl.u32 %v463, 7
    %v465 = vsub.s32 %v462, %v464
    %v466 = vrot.slane %v452, %v465
    %v467 = vcombine.low %v411, %v427
    %v468 = vcombine.high %v411, %v427
    %v470 = vunpack.c.l.s4 1934713408
    %v471 = vunpack.c.0.s8 %v470
    %v472 = vlaneseq
    %v473 = vshrl.u32 %v472, 7
    %v474 = vsub.s32 %v471, %v473
    %v475 = vrot.slane %v467, %v474
    %v477 = vunpack.c.l.s4 1934713408
    %v478 = vunpack.c.0.s8 %v477
    %v479 = vlaneseq
    %v480 = vshrl.u32 %v479, 7
    %v481 = vsub.s32 %v478, %v480
    %v482 = vrot.slane %v468, %v481
    %v483 = vcombine.low %v418, %v434
    %v484 = vcombine.high %v418, %v434
    %v486 = vunpack.c.l.s4 1934713408
    %v487 = vunpack.c.0.s8 %v486
    %v488 = vlaneseq
    %v489 = vshrl.u32 %v488, 7
    %v490 = vsub.s32 %v487, %v489
    %v491 = vrot.slane %v483, %v490
    %v493 = vunpack.c.l.s4 1934713408
    %v494 = vunpack.c.0.s8 %v493
    %v495 = vlaneseq
    %v496 = vshrl.u32 %v495, 7
    %v497 = vsub.s32 %v494, %v496
    %v498 = vrot.slane %v484, %v497
    %v499 = vcombine.low %v443, %v459
    %v500 = vcombine.high %v443, %v459
    %v502 = vunpack.c.l.s4 1934713408
    %v503 = vunpack.c.0.s8 %v502
    %v504 = vlaneseq
    %v505 = vshrl.u32 %v504, 7
    %v506 = vsub.s32 %v503, %v505
    %v507 = vrot.slane %v499, %v506
    %v509 = vunpack.c.l.s4 1934713408
    %v510 = vunpack.c.0.s8 %v509
    %v511 = vlaneseq
    %v512 = vshrl.u32 %v511, 7
    %v513 = vsub.s32 %v510, %v512
    %v514 = vrot.slane %v500, %v513
    %v515 = vcombine.low %v450, %v466
    %v516 = vcombine.high %v450, %v466
    %v518 = vunpack.c.l.s4 1934713408
    %v519 = vunpack.c.0.s8 %v518
    %v520 = vlaneseq
    %v521 = vshrl.u32 %v520, 7
    %v522 = vsub.s32 %v519, %v521
    %v523 = vrot.slane %v515, %v522
    %v525 = vunpack.c.l.s4 1934713408
    %v526 = vunpack.c.0.s8 %v525
    %v527 = vlaneseq
    %v528 = vshrl.u32 %v527, 7
    %v529 = vsub.s32 %v526, %v528
    %v530 = vrot.slane %v516, %v529
    %v531 = vcombine.low %v475, %v507
    %v532 = vcombine.high %v475, %v507
    %v533 = vcombine.low %v482, %v514
    %v534 = vcombine.high %v482, %v514
    %v535 = vcombine.low %v491, %v523
    %v536 = vcombine.high %v491, %v523
    %v537 = vcombine.low %v498, %v530
    %v538 = vcombine.high %v498, %v530
    %v539 = vcombine.low %v133, %v190
    %v540 = vcombine.high %v133, %v190
    %v542 = vunpack.c.l.s4 1983009808
    %v543 = vunpack.c.0.s8 %v542
    %v544 = vlaneseq
    %v545 = vshrl.u32 %v544, 7
    %v546 = vsub.s32 %v543, %v545
    %v547 = vrot.slane %v539, %v546
    %v549 = vunpack.c.l.s4 1983009808
    %v550 = vunpack.c.0.s8 %v549
    %v551 = vlaneseq
    %v552 = vshrl.u32 %v551, 7
    %v553 = vsub.s32 %v550, %v552
    %v554 = vrot.slane %v540, %v553
    %v555 = vcombine.low %v184, %v196
    %v556 = vcombine.high %v184, %v196
    %v558 = vunpack.c.l.s4 1983009808
    %v559 = vunpack.c.0.s8 %v558
    %v560 = vlaneseq
    %v561 = vshrl.u32 %v560, 7
    %v562 = vsub.s32 %v559, %v561
    %v563 = vrot.slane %v555, %v562
    %v565 = vunpack.c.l.s4 1983009808
    %v566 = vunpack.c.0.s8 %v565
    %v567 = vlaneseq
    %v568 = vshrl.u32 %v567, 7
    %v569 = vsub.s32 %v566, %v568
    %v570 = vrot.slane %v556, %v569
    %v571 = vcombine.low %v547, %v563
    %v572 = vcombine.high %v547, %v563
    %v574 = vunpack.c.l.s4 1934713408
    %v575 = vunpack.c.0.s8 %v574
    %v576 = vlaneseq
    %v577 = vshrl.u32 %v576, 7
    %v578 = vsub.s32 %v575, %v577
    %v579 = vrot.slane %v571, %v578
    %v581 = vunpack.c.l.s4 1934713408
    %v582 = vunpack.c.0.s8 %v581
    %v583 = vlaneseq
    %v584 = vshrl.u32 %v583, 7
    %v585 = vsub.s32 %v582, %v584
    %v586 = vrot.slane %v572, %v585
    %v587 = vcombine.low %v554, %v570
    %v588 = vcombine.high %v554, %v570
    %v590 = vunpack.c.l.s4 1934713408
    %v591 = vunpack.c.0.s8 %v590
    %v592 = vlaneseq
    %v593 = vshrl.u32 %v592, 7
    %v594 = vsub.s32 %v591, %v593
    %v595 = vrot.slane %v587, %v594
    %v597 = vunpack.c.l.s4 1934713408
    %v598 = vunpack.c.0.s8 %v597
    %v599 = vlaneseq
    %v600 = vshrl.u32 %v599, 7
    %v601 = vsub.s32 %v598, %v600
    %v602 = vrot.slane %v588, %v601
    %v603 = vcombine.high %v579, 0.0
    %v604 = vcombine.high %v586, 0.0
    %v605 = vcombine.high %v595, 0.0
    %v606 = vcombine.high %v602, 0.0
    %v607 = vcombine.low %v327, %v329
    %v608 = vcombine.high %v327, %v329
    %v610 = vunpack.c.l.s4 1983009808
    %v611 = vunpack.c.0.s8 %v610
    %v612 = vlaneseq
    %v613 = vshrl.u32 %v612, 7
    %v614 = vsub.s32 %v611, %v613
    %v615 = vrot.slane %v607, %v614
    %v617 = vunpack.c.l.s4 1983009808
    %v618 = vunpack.c.0.s8 %v617
    %v619 = vlaneseq
    %v620 = vshrl.u32 %v619, 7
    %v621 = vsub.s32 %v618, %v620
    %v622 = vrot.slane %v608, %v621
    %v623 = vcombine.low %v328, %v330
    %v624 = vcombine.high %v328, %v330
    %v626 = vunpack.c.l.s4 1983009808
    %v627 = vunpack.c.0.s8 %v626
    %v628 = vlaneseq
    %v629 = vshrl.u32 %v628, 7
    %v630 = vsub.s32 %v627, %v629
    %v631 = vrot.slane %v623, %v630
    %v633 = vunpack.c.l.s4 1983009808
    %v634 = vunpack.c.0.s8 %v633
    %v635 = vlaneseq
    %v636 = vshrl.u32 %v635, 7
    %v637 = vsub.s32 %v634, %v636
    %v638 = vrot.slane %v624, %v637
    %v639 = vcombine.low %v331, %v333
    %v640 = vcombine.high %v331, %v333
    %v642 = vunpack.c.l.s4 1983009808
    %v643 = vunpack.c.0.s8 %v642
    %v644 = vlaneseq
    %v645 = vshrl.u32 %v644, 7
    %v646 = vsub.s32 %v643, %v645
    %v647 = vrot.slane %v639, %v646
    %v649 = vunpack.c.l.s4 1983009808
    %v650 = vunpack.c.0.s8 %v649
    %v651 = vlaneseq
    %v652 = vshrl.u32 %v651, 7
    %v653 = vsub.s32 %v650, %v652
    %v654 = vrot.slane %v640, %v653
    %v655 = vcombine.low %v332, %v334
    %v656 = vcombine.high %v332, %v334
    %v658 = vunpack.c.l.s4 1983009808
    %v659 = vunpack.c.0.s8 %v658
    %v660 = vlaneseq
    %v661 = vshrl.u32 %v660, 7
    %v662 = vsub.s32 %v659, %v661
    %v663 = vrot.slane %v655, %v662
    %v665 = vunpack.c.l.s4 1983009808
    %v666 = vunpack.c.0.s8 %v665
    %v667 = vlaneseq
    %v668 = vshrl.u32 %v667, 7
    %v669 = vsub.s32 %v666, %v668
    %v670 = vrot.slane %v656, %v669
    %v671 = vcombine.low %v615, %v631
    %v672 = vcombine.high %v615, %v631
    %v674 = vunpack.c.l.s4 1934713408
    %v675 = vunpack.c.0.s8 %v674
    %v676 = vlaneseq
    %v677 = vshrl.u32 %v676, 7
    %v678 = vsub.s32 %v675, %v677
    %v679 = vrot.slane %v671, %v678
    %v681 = vunpack.c.l.s4 1934713408
    %v682 = vunpack.c.0.s8 %v681
    %v683 = vlaneseq
    %v684 = vshrl.u32 %v683, 7
    %v685 = vsub.s32 %v682, %v684
    %v686 = vrot.slane %v672, %v685
    %v687 = vcombine.low %v622, %v638
    %v688 = vcombine.high %v622, %v638
    %v690 = vunpack.c.l.s4 1934713408
    %v691 = vunpack.c.0.s8 %v690
    %v692 = vlaneseq
    %v693 = vshrl.u32 %v692, 7
    %v694 = vsub.s32 %v691, %v693
    %v695 = vrot.slane %v687, %v694
    %v697 = vunpack.c.l.s4 1934713408
    %v698 = vunpack.c.0.s8 %v697
    %v699 = vlaneseq
    %v700 = vshrl.u32 %v699, 7
    %v701 = vsub.s32 %v698, %v700
    %v702 = vrot.slane %v688, %v701
    %v703 = vcombine.low %v647, %v663
    %v704 = vcombine.high %v647, %v663
    %v706 = vunpack.c.l.s4 1934713408
    %v707 = vunpack.c.0.s8 %v706
    %v708 = vlaneseq
    %v709 = vshrl.u32 %v708, 7
    %v710 = vsub.s32 %v707, %v709
    %v711 = vrot.slane %v703, %v710
    %v713 = vunpack.c.l.s4 1934713408
    %v714 = vunpack.c.0.s8 %v713
    %v715 = vlaneseq
    %v716 = vshrl.u32 %v715, 7
    %v717 = vsub.s32 %v714, %v716
    %v718 = vrot.slane %v704, %v717
    %v719 = vcombine.low %v654, %v670
    %v720 = vcombine.high %v654, %v670
    %v722 = vunpack.c.l.s4 1934713408
    %v723 = vunpack.c.0.s8 %v722
    %v724 = vlaneseq
    %v725 = vshrl.u32 %v724, 7
    %v726 = vsub.s32 %v723, %v725
    %v727 = vrot.slane %v719, %v726
    %v729 = vunpack.c.l.s4 1934713408
    %v730 = vunpack.c.0.s8 %v729
    %v731 = vlaneseq
    %v732 = vshrl.u32 %v731, 7
    %v733 = vsub.s32 %v730, %v732
    %v734 = vrot.slane %v720, %v733
    %v735 = vcombine.low %v679, %v711
    %v736 = vcombine.high %v679, %v711
    %v737 = vcombine.low %v686, %v718
    %v738 = vcombine.high %v686, %v718
    %v739 = vcombine.low %v695, %v727
    %v740 = vcombine.high %v695, %v727
    %v741 = vcombine.low %v702, %v734
    %v742 = vcombine.high %v702, %v734
    %v743 = vcombine.low %v375, %v382
    %v745 = vunpack.c.l.s4 1983009808
    %v746 = vunpack.c.0.s8 %v745
    %v747 = vlaneseq
    %v748 = vshrl.u32 %v747, 7
    %v749 = vsub.s32 %v746, %v748
    %v750 = vrot.slane %v743, %v749
    %v751 = vcombine.low %v399, %v400
    %v753 = vunpack.c.l.s4 1983009808
    %v754 = vunpack.c.0.s8 %v753
    %v755 = vlaneseq
    %v756 = vshrl.u32 %v755, 7
    %v757 = vsub.s32 %v754, %v756
    %v758 = vrot.slane %v751, %v757
    %v759 = vcombine.low %v391, %v398
    %v761 = vunpack.c.l.s4 1983009808
    %v762 = vunpack.c.0.s8 %v761
    %v763 = vlaneseq
    %v764 = vshrl.u32 %v763, 7
    %v765 = vsub.s32 %v762, %v764
    %v766 = vrot.slane %v759, %v765
    %v767 = vcombine.low %v401, %v402
    %v769 = vunpack.c.l.s4 1983009808
    %v770 = vunpack.c.0.s8 %v769
    %v771 = vlaneseq
    %v772 = vshrl.u32 %v771, 7
    %v773 = vsub.s32 %v770, %v772
    %v774 = vrot.slane %v767, %v773
    %v775 = vcombine.low %v750, %v758
    %v776 = vcombine.high %v750, %v758
    %v778 = vunpack.c.l.s4 1934713408
    %v779 = vunpack.c.0.s8 %v778
    %v780 = vlaneseq
    %v781 = vshrl.u32 %v780, 7
    %v782 = vsub.s32 %v779, %v781
    %v783 = vrot.slane %v775, %v782
    %v785 = vunpack.c.l.s4 1934713408
    %v786 = vunpack.c.0.s8 %v785
    %v787 = vlaneseq
    %v788 = vshrl.u32 %v787, 7
    %v789 = vsub.s32 %v786, %v788
    %v790 = vrot.slane %v776, %v789
    %v791 = vcombine.low %v766, %v774
    %v792 = vcombine.high %v766, %v774
    %v794 = vunpack.c.l.s4 1934713408
    %v795 = vunpack.c.0.s8 %v794
    %v796 = vlaneseq
    %v797 = vshrl.u32 %v796, 7
    %v798 = vsub.s32 %v795, %v797
    %v799 = vrot.slane %v791, %v798
    %v801 = vunpack.c.l.s4 1934713408
    %v802 = vunpack.c.0.s8 %v801
    %v803 = vlaneseq
    %v804 = vshrl.u32 %v803, 7
    %v805 = vsub.s32 %v802, %v804
    %v806 = vrot.slane %v792, %v805
    %v807 = vcombine.low %v783, %v799
    %v808 = vcombine.high %v783, %v799
    %v809 = vcombine.low %v790, %v806
    %v810 = vcombine.high %v790, %v806
    %v811 = vcombine.low %v531, %v533
    %v812 = vcombine.high %v531, %v533
    %v814 = vunpack.c.l.s4 1983009808
    %v815 = vunpack.c.0.s8 %v814
    %v816 = vlaneseq
    %v817 = vshrl.u32 %v816, 7
    %v818 = vsub.s32 %v815, %v817
    %v819 = vrot.slane %v811, %v818
    %v821 = vunpack.c.l.s4 1983009808
    %v822 = vunpack.c.0.s8 %v821
    %v823 = vlaneseq
    %v824 = vshrl.u32 %v823, 7
    %v825 = vsub.s32 %v822, %v824
    %v826 = vrot.slane %v812, %v825
    %v827 = vcombine.low %v532, %v534
    %v828 = vcombine.high %v532, %v534
    %v830 = vunpack.c.l.s4 1983009808
    %v831 = vunpack.c.0.s8 %v830
    %v832 = vlaneseq
    %v833 = vshrl.u32 %v832, 7
    %v834 = vsub.s32 %v831, %v833
    %v835 = vrot.slane %v827, %v834
    %v837 = vunpack.c.l.s4 1983009808
    %v838 = vunpack.c.0.s8 %v837
    %v839 = vlaneseq
    %v840 = vshrl.u32 %v839, 7
    %v841 = vsub.s32 %v838, %v840
    %v842 = vrot.slane %v828, %v841
    %v843 = vcombine.low %v535, %v537
    %v844 = vcombine.high %v535, %v537
    %v846 = vunpack.c.l.s4 1983009808
    %v847 = vunpack.c.0.s8 %v846
    %v848 = vlaneseq
    %v849 = vshrl.u32 %v848, 7
    %v850 = vsub.s32 %v847, %v849
    %v851 = vrot.slane %v843, %v850
    %v853 = vunpack.c.l.s4 1983009808
    %v854 = vunpack.c.0.s8 %v853
    %v855 = vlaneseq
    %v856 = vshrl.u32 %v855, 7
    %v857 = vsub.s32 %v854, %v856
    %v858 = vrot.slane %v844, %v857
    %v859 = vcombine.low %v536, %v538
    %v860 = vcombine.high %v536, %v538
    %v862 = vunpack.c.l.s4 1983009808
    %v863 = vunpack.c.0.s8 %v862
    %v864 = vlaneseq
    %v865 = vshrl.u32 %v864, 7
    %v866 = vsub.s32 %v863, %v865
    %v867 = vrot.slane %v859, %v866
    %v869 = vunpack.c.l.s4 1983009808
    %v870 = vunpack.c.0.s8 %v869
    %v871 = vlaneseq
    %v872 = vshrl.u32 %v871, 7
    %v873 = vsub.s32 %v870, %v872
    %v874 = vrot.slane %v860, %v873
    %v875 = vcombine.low %v819, %v835
    %v876 = vcombine.high %v819, %v835
    %v878 = vunpack.c.l.s4 1934713408
    %v879 = vunpack.c.0.s8 %v878
    %v880 = vlaneseq
    %v881 = vshrl.u32 %v880, 7
    %v882 = vsub.s32 %v879, %v881
    %v883 = vrot.slane %v875, %v882
    %v885 = vunpack.c.l.s4 1934713408
    %v886 = vunpack.c.0.s8 %v885
    %v887 = vlaneseq
    %v888 = vshrl.u32 %v887, 7
    %v889 = vsub.s32 %v886, %v888
    %v890 = vrot.slane %v876, %v889
    %v891 = vcombine.low %v826, %v842
    %v892 = vcombine.high %v826, %v842
    %v894 = vunpack.c.l.s4 1934713408
    %v895 = vunpack.c.0.s8 %v894
    %v896 = vlaneseq
    %v897 = vshrl.u32 %v896, 7
    %v898 = vsub.s32 %v895, %v897
    %v899 = vrot.slane %v891, %v898
    %v901 = vunpack.c.l.s4 1934713408
    %v902 = vunpack.c.0.s8 %v901
    %v903 = vlaneseq
    %v904 = vshrl.u32 %v903, 7
    %v905 = vsub.s32 %v902, %v904
    %v906 = vrot.slane %v892, %v905
    %v907 = vcombine.low %v851, %v867
    %v908 = vcombine.high %v851, %v867
    %v910 = vunpack.c.l.s4 1934713408
    %v911 = vunpack.c.0.s8 %v910
    %v912 = vlaneseq
    %v913 = vshrl.u32 %v912, 7
    %v914 = vsub.s32 %v911, %v913
    %v915 = vrot.slane %v907, %v914
    %v917 = vunpack.c.l.s4 1934713408
    %v918 = vunpack.c.0.s8 %v917
    %v919 = vlaneseq
    %v920 = vshrl.u32 %v919, 7
    %v921 = vsub.s32 %v918, %v920
    %v922 = vrot.slane %v908, %v921
    %v923 = vcombine.low %v858, %v874
    %v924 = vcombine.high %v858, %v874
    %v926 = vunpack.c.l.s4 1934713408
    %v927 = vunpack.c.0.s8 %v926
    %v928 = vlaneseq
    %v929 = vshrl.u32 %v928, 7
    %v930 = vsub.s32 %v927, %v929
    %v931 = vrot.slane %v923, %v930
    %v933 = vunpack.c.l.s4 1934713408
    %v934 = vunpack.c.0.s8 %v933
    %v935 = vlaneseq
    %v936 = vshrl.u32 %v935, 7
    %v937 = vsub.s32 %v934, %v936
    %v938 = vrot.slane %v924, %v937
    %v939 = vcombine.low %v883, %v915
    %v940 = vcombine.high %v883, %v915
    %v941 = vcombine.low %v890, %v922
    %v942 = vcombine.high %v890, %v922
    %v943 = vcombine.low %v899, %v931
    %v944 = vcombine.high %v899, %v931
    %v945 = vcombine.low %v906, %v938
    %v946 = vcombine.high %v906, %v938
    %v947 = vcombine.low %v579, %v586
    %v949 = vunpack.c.l.s4 1983009808
    %v950 = vunpack.c.0.s8 %v949
    %v951 = vlaneseq
    %v952 = vshrl.u32 %v951, 7
    %v953 = vsub.s32 %v950, %v952
    %v954 = vrot.slane %v947, %v953
    %v955 = vcombine.low %v603, %v604
    %v957 = vunpack.c.l.s4 1983009808
    %v958 = vunpack.c.0.s8 %v957
    %v959 = vlaneseq
    %v960 = vshrl.u32 %v959, 7
    %v961 = vsub.s32 %v958, %v960
    %v962 = vrot.slane %v955, %v961
    %v963 = vcombine.low %v595, %v602
    %v965 = vunpack.c.l.s4 1983009808
    %v966 = vunpack.c.0.s8 %v965
    %v967 = vlaneseq
    %v968 = vshrl.u32 %v967, 7
    %v969 = vsub.s32 %v966, %v968
    %v970 = vrot.slane %v963, %v969
    %v971 = vcombine.low %v605, %v606
    %v973 = vunpack.c.l.s4 1983009808
    %v974 = vunpack.c.0.s8 %v973
    %v975 = vlaneseq
    %v976 = vshrl.u32 %v975, 7
    %v977 = vsub.s32 %v974, %v976
    %v978 = vrot.slane %v971, %v977
    %v979 = vcombine.low %v954, %v962
    %v980 = vcombine.high %v954, %v962
    %v982 = vunpack.c.l.s4 1934713408
    %v983 = vunpack.c.0.s8 %v982
    %v984 = vlaneseq
    %v985 = vshrl.u32 %v984, 7
    %v986 = vsub.s32 %v983, %v985
    %v987 = vrot.slane %v979, %v986
    %v989 = vunpack.c.l.s4 1934713408
    %v990 = vunpack.c.0.s8 %v989
    %v991 = vlaneseq
    %v992 = vshrl.u32 %v991, 7
    %v993 = vsub.s32 %v990, %v992
    %v994 = vrot.slane %v980, %v993
    %v995 = vcombine.low %v970, %v978
    %v996 = vcombine.high %v970, %v978
    %v998 = vunpack.c.l.s4 1934713408
    %v999 = vunpack.c.0.s8 %v998
    %v1000 = vlaneseq
    %v1001 = vshrl.u32 %v1000, 7
    %v1002 = vsub.s32 %v999, %v1001
    %v1003 = vrot.slane %v995, %v1002
    %v1005 = vunpack.c.l.s4 1934713408
    %v1006 = vunpack.c.0.s8 %v1005
    %v1007 = vlaneseq
    %v1008 = vshrl.u32 %v1007, 7
    %v1009 = vsub.s32 %v1006, %v1008
    %v1010 = vrot.slane %v996, %v1009
    %v1011 = vcombine.low %v987, %v1003
    %v1012 = vcombine.high %v987, %v1003
    %v1013 = vcombine.low %v994, %v1010
    %v1014 = vcombine.high %v994, %v1010
    %v1015 = vpack.c.bf16 %v735, %v735
    %v1016 = vpack.c.bf16 %v736, %v736
    %v1017 = vpack.c.bf16 %v737, %v737
    %v1018 = vpack.c.bf16 %v738, %v738
    %v1019 = vpack.c.bf16 %v939, %v939
    %v1020 = vpack.c.bf16 %v940, %v940
    %v1021 = vpack.c.bf16 %v941, %v941
    %v1022 = vpack.c.bf16 %v942, %v942
    %v1023 = vpack.c.bf16 %v739, %v739
    %v1024 = vpack.c.bf16 %v740, %v740
    %v1025 = vpack.c.bf16 %v741, %v741
    %v1026 = vpack.c.bf16 %v742, %v742
    %v1027 = vpack.c.bf16 %v943, %v943
    %v1028 = vpack.c.bf16 %v944, %v944
    %v1029 = vpack.c.bf16 %v945, %v945
    %v1030 = vpack.c.bf16 %v946, %v946
    %v1031 = vpack.c.bf16 %v807, %v807
    %v1032 = vpack.c.bf16 %v808, %v808
    %v1033 = vpack.c.bf16 %v809, %v809
    %v1034 = vpack.c.bf16 %v810, %v810
    %v1035 = vpack.c.bf16 %v1011, %v1011
    %v1036 = vpack.c.bf16 %v1012, %v1012
    %v1037 = vpack.c.bf16 %v1013, %v1013
    %v1038 = vpack.c.bf16 %v1014, %v1014
    %v1039 = vlaneseq
    %v1040 = vshrl.u32 %v1039, 7
    %v1041 = vlaneseq
    %v1042 = vand.u32 %v1041, 127
    %vm1043 = vcmp.le.s32.totalorder %v1042, %v1040
    %v1044 = vsel %vm1043, 0.0, -1e+30
    %vm1045 = vcmask 130048
    %v1047 = vsel %vm1045, %v1015, 0
    %v1050 = vsel %vm1045, %v1023, 0
    %1052 = vmatprep.subr.bf16.mxu0 0
    %1053 = vmatpush1.bf16.xpose.msra.mxu0 %v1050
    %1054 = vmatprep.subr.bf16.mxu0 0
    %1055 = vmatpush1.bf16.xpose.msra.mxu0 0
    %1056 = vmatprep.subr.bf16.mxu0 0
    %1057 = vmatpush1.bf16.xpose.msra.mxu0 0
    %1058 = vmatprep.subr.bf16.mxu0 0
    %1059 = vmatpush1.bf16.xpose.msra.mxu0 0
    %1060 = vmatprep.subr.bf16.mxu0 0
    %1061 = vmatpush1.bf16.xpose.msra.mxu0 0
    %1062 = vmatprep.subr.bf16.mxu0 0
    %1063 = vmatpush1.bf16.xpose.msra.mxu0 0
    %1064 = vmatprep.subr.bf16.mxu0 0
    %1065 = vmatpush1.bf16.xpose.msra.mxu0 0
    %1066 = vmatprep.subr.bf16.mxu0 0
    %1067 = vmatpush1.bf16.xpose.msra.mxu0 0
    %1068 = vmatprep.subr.bf16.mxu0 0
    %1069 = vmatpush1.bf16.xpose.msra.mxu0 0
    %1070 = vmatprep.subr.bf16.mxu0 0
    %1071 = vmatpush1.bf16.xpose.msra.mxu0 0
    %1072 = vmatprep.subr.bf16.mxu0 0
    %1073 = vmatpush1.bf16.xpose.msra.mxu0 0
    %1074 = vmatprep.subr.bf16.mxu0 0
    %1075 = vmatpush1.bf16.xpose.msra.mxu0 0
    %1076 = vmatprep.subr.bf16.mxu0 0
    %1077 = vmatpush1.bf16.xpose.msra.mxu0 0
    %1078 = vmatprep.subr.bf16.mxu0 0
    %1079 = vmatpush1.bf16.xpose.msra.mxu0 0
    %1080 = vmatprep.subr.bf16.mxu0 0
    %1081 = vmatpush1.bf16.xpose.msra.mxu0 0
    %1082 = vmatprep.subr.bf16.mxu0 0
    %1083 = vmatpush1.bf16.xpose.msra.mxu0 0
    %1084 = vmatprep.mubr.bf16.mxu0 0
    %1085 = vmatmul.mubr.bf16.gmra.mrb[0].mxu0 %v1047
    %v1086 = vpop.f32.mrb[0].mxu0
    %v1087 = vadd.f32 %v1044, %v1086
    %v1088 = vpop.f32.mrb[0].mxu0
    %v1089 = vpop.f32.mrb[0].mxu0
    %v1090 = vpop.f32.mrb[0].mxu0
    %1091 = vdwg.mxu0
    %v1093 = vsel %vm1045, %v1016, 0
    %v1096 = vsel %vm1045, %v1024, 0
    %1098 = vmatprep.subr.bf16.mxu0 0
    %1099 = vmatpush1.bf16.xpose.msra.mxu0 %v1096
    %1100 = vmatprep.subr.bf16.mxu0 0
    %1101 = vmatpush1.bf16.xpose.msra.mxu0 0
    %1102 = vmatprep.subr.bf16.mxu0 0
    %1103 = vmatpush1.bf16.xpose.msra.mxu0 0
    %1104 = vmatprep.subr.bf16.mxu0 0
    %1105 = vmatpush1.bf16.xpose.msra.mxu0 0
    %1106 = vmatprep.subr.bf16.mxu0 0
    %1107 = vmatpush1.bf16.xpose.msra.mxu0 0
    %1108 = vmatprep.subr.bf16.mxu0 0
    %1109 = vmatpush1.bf16.xpose.msra.mxu0 0
    %1110 = vmatprep.subr.bf16.mxu0 0
    %1111 = vmatpush1.bf16.xpose.msra.mxu0 0
    %1112 = vmatprep.subr.bf16.mxu0 0
    %1113 = vmatpush1.bf16.xpose.msra.mxu0 0
    %1114 = vmatprep.subr.bf16.mxu0 0
    %1115 = vmatpush1.bf16.xpose.msra.mxu0 0
    %1116 = vmatprep.subr.bf16.mxu0 0
    %1117 = vmatpush1.bf16.xpose.msra.mxu0 0
    %1118 = vmatprep.subr.bf16.mxu0 0
    %1119 = vmatpush1.bf16.xpose.msra.mxu0 0
    %1120 = vmatprep.subr.bf16.mxu0 0
    %1121 = vmatpush1.bf16.xpose.msra.mxu0 0
    %1122 = vmatprep.subr.bf16.mxu0 0
    %1123 = vmatpush1.bf16.xpose.msra.mxu0 0
    %1124 = vmatprep.subr.bf16.mxu0 0
    %1125 = vmatpush1.bf16.xpose.msra.mxu0 0
    %1126 = vmatprep.subr.bf16.mxu0 0
    %1127 = vmatpush1.bf16.xpose.msra.mxu0 0
    %1128 = vmatprep.subr.bf16.mxu0 0
    %1129 = vmatpush1.bf16.xpose.msra.mxu0 0
    %1130 = vmatprep.mubr.bf16.mxu0 0
    %1131 = vmatmul.mubr.bf16.gmra.mrb[0].mxu0 %v1093
    %v1132 = vpop.f32.mrb[0].mxu0
    %v1133 = vadd.f32 %v1044, %v1132
    %v1134 = vpop.f32.mrb[0].mxu0
    %v1135 = vpop.f32.mrb[0].mxu0
    %v1136 = vpop.f32.mrb[0].mxu0
    %1137 = vdwg.mxu0
    %v1139 = vsel %vm1045, %v1017, 0
    %v1142 = vsel %vm1045, %v1025, 0
    %1144 = vmatprep.subr.bf16.mxu0 0
    %1145 = vmatpush1.bf16.xpose.msra.mxu0 %v1142
    %1146 = vmatprep.subr.bf16.mxu0 0
    %1147 = vmatpush1.bf16.xpose.msra.mxu0 0
    %1148 = vmatprep.subr.bf16.mxu0 0
    %1149 = vmatpush1.bf16.xpose.msra.mxu0 0
    %1150 = vmatprep.subr.bf16.mxu0 0
    %1151 = vmatpush1.bf16.xpose.msra.mxu0 0
    %1152 = vmatprep.subr.bf16.mxu0 0
    %1153 = vmatpush1.bf16.xpose.msra.mxu0 0
    %1154 = vmatprep.subr.bf16.mxu0 0
    %1155 = vmatpush1.bf16.xpose.msra.mxu0 0
    %1156 = vmatprep.subr.bf16.mxu0 0
    %1157 = vmatpush1.bf16.xpose.msra.mxu0 0
    %1158 = vmatprep.subr.bf16.mxu0 0
    %1159 = vmatpush1.bf16.xpose.msra.mxu0 0
    %1160 = vmatprep.subr.bf16.mxu0 0
    %1161 = vmatpush1.bf16.xpose.msra.mxu0 0
    %1162 = vmatprep.subr.bf16.mxu0 0
    %1163 = vmatpush1.bf16.xpose.msra.mxu0 0
    %1164 = vmatprep.subr.bf16.mxu0 0
    %1165 = vmatpush1.bf16.xpose.msra.mxu0 0
    %1166 = vmatprep.subr.bf16.mxu0 0
    %1167 = vmatpush1.bf16.xpose.msra.mxu0 0
    %1168 = vmatprep.subr.bf16.mxu0 0
    %1169 = vmatpush1.bf16.xpose.msra.mxu0 0
    %1170 = vmatprep.subr.bf16.mxu0 0
    %1171 = vmatpush1.bf16.xpose.msra.mxu0 0
    %1172 = vmatprep.subr.bf16.mxu0 0
    %1173 = vmatpush1.bf16.xpose.msra.mxu0 0
    %1174 = vmatprep.subr.bf16.mxu0 0
    %1175 = vmatpush1.bf16.xpose.msra.mxu0 0
    %1176 = vmatprep.mubr.bf16.mxu0 0
    %1177 = vmatmul.mubr.bf16.gmra.mrb[0].mxu0 %v1139
    %v1178 = vpop.f32.mrb[0].mxu0
    %v1179 = vadd.f32 %v1044, %v1178
    %v1180 = vpop.f32.mrb[0].mxu0
    %v1181 = vpop.f32.mrb[0].mxu0
    %v1182 = vpop.f32.mrb[0].mxu0
    %1183 = vdwg.mxu0
    %v1185 = vsel %vm1045, %v1018, 0
    %v1188 = vsel %vm1045, %v1026, 0
    %1190 = vmatprep.subr.bf16.mxu0 0
    %1191 = vmatpush1.bf16.xpose.msra.mxu0 %v1188
    %1192 = vmatprep.subr.bf16.mxu0 0
    %1193 = vmatpush1.bf16.xpose.msra.mxu0 0
    %1194 = vmatprep.subr.bf16.mxu0 0
    %1195 = vmatpush1.bf16.xpose.msra.mxu0 0
    %1196 = vmatprep.subr.bf16.mxu0 0
    %1197 = vmatpush1.bf16.xpose.msra.mxu0 0
    %1198 = vmatprep.subr.bf16.mxu0 0
    %1199 = vmatpush1.bf16.xpose.msra.mxu0 0
    %1200 = vmatprep.subr.bf16.mxu0 0
    %1201 = vmatpush1.bf16.xpose.msra.mxu0 0
    %1202 = vmatprep.subr.bf16.mxu0 0
    %1203 = vmatpush1.bf16.xpose.msra.mxu0 0
    %1204 = vmatprep.subr.bf16.mxu0 0
    %1205 = vmatpush1.bf16.xpose.msra.mxu0 0
    %1206 = vmatprep.subr.bf16.mxu0 0
    %1207 = vmatpush1.bf16.xpose.msra.mxu0 0
    %1208 = vmatprep.subr.bf16.mxu0 0
    %1209 = vmatpush1.bf16.xpose.msra.mxu0 0
    %1210 = vmatprep.subr.bf16.mxu0 0
    %1211 = vmatpush1.bf16.xpose.msra.mxu0 0
    %1212 = vmatprep.subr.bf16.mxu0 0
    %1213 = vmatpush1.bf16.xpose.msra.mxu0 0
    %1214 = vmatprep.subr.bf16.mxu0 0
    %1215 = vmatpush1.bf16.xpose.msra.mxu0 0
    %1216 = vmatprep.subr.bf16.mxu0 0
    %1217 = vmatpush1.bf16.xpose.msra.mxu0 0
    %1218 = vmatprep.subr.bf16.mxu0 0
    %1219 = vmatpush1.bf16.xpose.msra.mxu0 0
    %1220 = vmatprep.subr.bf16.mxu0 0
    %1221 = vmatpush1.bf16.xpose.msra.mxu0 0
    %1222 = vmatprep.mubr.bf16.mxu0 0
    %1223 = vmatmul.mubr.bf16.gmra.mrb[0].mxu0 %v1185
    %v1224 = vpop.f32.mrb[0].mxu0
    %v1225 = vadd.f32 %v1044, %v1224
    %v1226 = vpop.f32.mrb[0].mxu0
    %v1227 = vpop.f32.mrb[0].mxu0
    %v1228 = vpop.f32.mrb[0].mxu0
    %1229 = vdwg.mxu0
    %v1231 = vsel %vm1045, %v1019, 0
    %v1234 = vsel %vm1045, %v1027, 0
    %1236 = vmatprep.subr.bf16.mxu0 0
    %1237 = vmatpush1.bf16.xpose.msra.mxu0 %v1234
    %1238 = vmatprep.subr.bf16.mxu0 0
    %1239 = vmatpush1.bf16.xpose.msra.mxu0 0
    %1240 = vmatprep.subr.bf16.mxu0 0
    %1241 = vmatpush1.bf16.xpose.msra.mxu0 0
    %1242 = vmatprep.subr.bf16.mxu0 0
    %1243 = vmatpush1.bf16.xpose.msra.mxu0 0
    %1244 = vmatprep.subr.bf16.mxu0 0
    %1245 = vmatpush1.bf16.xpose.msra.mxu0 0
    %1246 = vmatprep.subr.bf16.mxu0 0
    %1247 = vmatpush1.bf16.xpose.msra.mxu0 0
    %1248 = vmatprep.subr.bf16.mxu0 0
    %1249 = vmatpush1.bf16.xpose.msra.mxu0 0
    %1250 = vmatprep.subr.bf16.mxu0 0
    %1251 = vmatpush1.bf16.xpose.msra.mxu0 0
    %1252 = vmatprep.subr.bf16.mxu0 0
    %1253 = vmatpush1.bf16.xpose.msra.mxu0 0
    %1254 = vmatprep.subr.bf16.mxu0 0
    %1255 = vmatpush1.bf16.xpose.msra.mxu0 0
    %1256 = vmatprep.subr.bf16.mxu0 0
    %1257 = vmatpush1.bf16.xpose.msra.mxu0 0
    %1258 = vmatprep.subr.bf16.mxu0 0
    %1259 = vmatpush1.bf16.xpose.msra.mxu0 0
    %1260 = vmatprep.subr.bf16.mxu0 0
    %1261 = vmatpush1.bf16.xpose.msra.mxu0 0
    %1262 = vmatprep.subr.bf16.mxu0 0
    %1263 = vmatpush1.bf16.xpose.msra.mxu0 0
    %1264 = vmatprep.subr.bf16.mxu0 0
    %1265 = vmatpush1.bf16.xpose.msra.mxu0 0
    %1266 = vmatprep.subr.bf16.mxu0 0
    %1267 = vmatpush1.bf16.xpose.msra.mxu0 0
    %1268 = vmatprep.mubr.bf16.mxu0 0
    %1269 = vmatmul.mubr.bf16.gmra.mrb[0].mxu0 %v1231
    %v1270 = vpop.f32.mrb[0].mxu0
    %v1271 = vadd.f32 %v1044, %v1270
    %v1272 = vpop.f32.mrb[0].mxu0
    %v1273 = vpop.f32.mrb[0].mxu0
    %v1274 = vpop.f32.mrb[0].mxu0
    %1275 = vdwg.mxu0
    %v1277 = vsel %vm1045, %v1020, 0
    %v1280 = vsel %vm1045, %v1028, 0
    %1282 = vmatprep.subr.bf16.mxu0 0
    %1283 = vmatpush1.bf16.xpose.msra.mxu0 %v1280
    %1284 = vmatprep.subr.bf16.mxu0 0
    %1285 = vmatpush1.bf16.xpose.msra.mxu0 0
    %1286 = vmatprep.subr.bf16.mxu0 0
    %1287 = vmatpush1.bf16.xpose.msra.mxu0 0
    %1288 = vmatprep.subr.bf16.mxu0 0
    %1289 = vmatpush1.bf16.xpose.msra.mxu0 0
    %1290 = vmatprep.subr.bf16.mxu0 0
    %1291 = vmatpush1.bf16.xpose.msra.mxu0 0
    %1292 = vmatprep.subr.bf16.mxu0 0
    %1293 = vmatpush1.bf16.xpose.msra.mxu0 0
    %1294 = vmatprep.subr.bf16.mxu0 0
    %1295 = vmatpush1.bf16.xpose.msra.mxu0 0
    %1296 = vmatprep.subr.bf16.mxu0 0
    %1297 = vmatpush1.bf16.xpose.msra.mxu0 0
    %1298 = vmatprep.subr.bf16.mxu0 0
    %1299 = vmatpush1.bf16.xpose.msra.mxu0 0
    %1300 = vmatprep.subr.bf16.mxu0 0
    %1301 = vmatpush1.bf16.xpose.msra.mxu0 0
    %1302 = vmatprep.subr.bf16.mxu0 0
    %1303 = vmatpush1.bf16.xpose.msra.mxu0 0
    %1304 = vmatprep.subr.bf16.mxu0 0
    %1305 = vmatpush1.bf16.xpose.msra.mxu0 0
    %1306 = vmatprep.subr.bf16.mxu0 0
    %1307 = vmatpush1.bf16.xpose.msra.mxu0 0
    %1308 = vmatprep.subr.bf16.mxu0 0
    %1309 = vmatpush1.bf16.xpose.msra.mxu0 0
    %1310 = vmatprep.subr.bf16.mxu0 0
    %1311 = vmatpush1.bf16.xpose.msra.mxu0 0
    %1312 = vmatprep.subr.bf16.mxu0 0
    %1313 = vmatpush1.bf16.xpose.msra.mxu0 0
    %1314 = vmatprep.mubr.bf16.mxu0 0
    %1315 = vmatmul.mubr.bf16.gmra.mrb[0].mxu0 %v1277
    %v1316 = vpop.f32.mrb[0].mxu0
    %v1317 = vadd.f32 %v1044, %v1316
    %v1318 = vpop.f32.mrb[0].mxu0
    %v1319 = vpop.f32.mrb[0].mxu0
    %v1320 = vpop.f32.mrb[0].mxu0
    %1321 = vdwg.mxu0
    %v1323 = vsel %vm1045, %v1021, 0
    %v1326 = vsel %vm1045, %v1029, 0
    %1328 = vmatprep.subr.bf16.mxu0 0
    %1329 = vmatpush1.bf16.xpose.msra.mxu0 %v1326
    %1330 = vmatprep.subr.bf16.mxu0 0
    %1331 = vmatpush1.bf16.xpose.msra.mxu0 0
    %1332 = vmatprep.subr.bf16.mxu0 0
    %1333 = vmatpush1.bf16.xpose.msra.mxu0 0
    %1334 = vmatprep.subr.bf16.mxu0 0
    %1335 = vmatpush1.bf16.xpose.msra.mxu0 0
    %1336 = vmatprep.subr.bf16.mxu0 0
    %1337 = vmatpush1.bf16.xpose.msra.mxu0 0
    %1338 = vmatprep.subr.bf16.mxu0 0
    %1339 = vmatpush1.bf16.xpose.msra.mxu0 0
    %1340 = vmatprep.subr.bf16.mxu0 0
    %1341 = vmatpush1.bf16.xpose.msra.mxu0 0
    %1342 = vmatprep.subr.bf16.mxu0 0
    %1343 = vmatpush1.bf16.xpose.msra.mxu0 0
    %1344 = vmatprep.subr.bf16.mxu0 0
    %1345 = vmatpush1.bf16.xpose.msra.mxu0 0
    %1346 = vmatprep.subr.bf16.mxu0 0
    %1347 = vmatpush1.bf16.xpose.msra.mxu0 0
    %1348 = vmatprep.subr.bf16.mxu0 0
    %1349 = vmatpush1.bf16.xpose.msra.mxu0 0
    %1350 = vmatprep.subr.bf16.mxu0 0
    %1351 = vmatpush1.bf16.xpose.msra.mxu0 0
    %1352 = vmatprep.subr.bf16.mxu0 0
    %1353 = vmatpush1.bf16.xpose.msra.mxu0 0
    %1354 = vmatprep.subr.bf16.mxu0 0
    %1355 = vmatpush1.bf16.xpose.msra.mxu0 0
    %1356 = vmatprep.subr.bf16.mxu0 0
    %1357 = vmatpush1.bf16.xpose.msra.mxu0 0
    %1358 = vmatprep.subr.bf16.mxu0 0
    %1359 = vmatpush1.bf16.xpose.msra.mxu0 0
    %1360 = vmatprep.mubr.bf16.mxu0 0
    %1361 = vmatmul.mubr.bf16.gmra.mrb[0].mxu0 %v1323
    %v1362 = vpop.f32.mrb[0].mxu0
    %v1363 = vadd.f32 %v1044, %v1362
    %v1364 = vpop.f32.mrb[0].mxu0
    %v1365 = vpop.f32.mrb[0].mxu0
    %v1366 = vpop.f32.mrb[0].mxu0
    %1367 = vdwg.mxu0
    %v1369 = vsel %vm1045, %v1022, 0
    %v1372 = vsel %vm1045, %v1030, 0
    %1374 = vmatprep.subr.bf16.mxu0 0
    %1375 = vmatpush1.bf16.xpose.msra.mxu0 %v1372
    %1376 = vmatprep.subr.bf16.mxu0 0
    %1377 = vmatpush1.bf16.xpose.msra.mxu0 0
    %1378 = vmatprep.subr.bf16.mxu0 0
    %1379 = vmatpush1.bf16.xpose.msra.mxu0 0
    %1380 = vmatprep.subr.bf16.mxu0 0
    %1381 = vmatpush1.bf16.xpose.msra.mxu0 0
    %1382 = vmatprep.subr.bf16.mxu0 0
    %1383 = vmatpush1.bf16.xpose.msra.mxu0 0
    %1384 = vmatprep.subr.bf16.mxu0 0
    %1385 = vmatpush1.bf16.xpose.msra.mxu0 0
    %1386 = vmatprep.subr.bf16.mxu0 0
    %1387 = vmatpush1.bf16.xpose.msra.mxu0 0
    %1388 = vmatprep.subr.bf16.mxu0 0
    %1389 = vmatpush1.bf16.xpose.msra.mxu0 0
    %1390 = vmatprep.subr.bf16.mxu0 0
    %1391 = vmatpush1.bf16.xpose.msra.mxu0 0
    %1392 = vmatprep.subr.bf16.mxu0 0
    %1393 = vmatpush1.bf16.xpose.msra.mxu0 0
    %1394 = vmatprep.subr.bf16.mxu0 0
    %1395 = vmatpush1.bf16.xpose.msra.mxu0 0
    %1396 = vmatprep.subr.bf16.mxu0 0
    %1397 = vmatpush1.bf16.xpose.msra.mxu0 0
    %1398 = vmatprep.subr.bf16.mxu0 0
    %1399 = vmatpush1.bf16.xpose.msra.mxu0 0
    %1400 = vmatprep.subr.bf16.mxu0 0
    %1401 = vmatpush1.bf16.xpose.msra.mxu0 0
    %1402 = vmatprep.subr.bf16.mxu0 0
    %1403 = vmatpush1.bf16.xpose.msra.mxu0 0
    %1404 = vmatprep.subr.bf16.mxu0 0
    %1405 = vmatpush1.bf16.xpose.msra.mxu0 0
    %1406 = vmatprep.mubr.bf16.mxu0 0
    %1407 = vmatmul.mubr.bf16.gmra.mrb[0].mxu0 %v1369
    %v1408 = vpop.f32.mrb[0].mxu0
    %v1409 = vadd.f32 %v1044, %v1408
    %v1410 = vpop.f32.mrb[0].mxu0
    %v1411 = vpop.f32.mrb[0].mxu0
    %v1412 = vpop.f32.mrb[0].mxu0
    %1413 = vdwg.mxu0
    %vm1414 = vcmask 64512
    %v1415 = vsel %vm1414, %v1087, -inf
    %1416 = vmax.xlane.f32.xlu0 %v1415
    %v1417 = vpop.xlane.xlu0 %1416
    %v1418 = vsel %vm1414, %v1133, -inf
    %1419 = vmax.xlane.f32.xlu0 %v1418
    %v1420 = vpop.xlane.xlu0 %1419
    %v1421 = vsel %vm1414, %v1179, -inf
    %1422 = vmax.xlane.f32.xlu0 %v1421
    %v1423 = vpop.xlane.xlu0 %1422
    %v1424 = vsel %vm1414, %v1225, -inf
    %1425 = vmax.xlane.f32.xlu0 %v1424
    %v1426 = vpop.xlane.xlu0 %1425
    %v1427 = vsel %vm1414, %v1271, -inf
    %1428 = vmax.xlane.f32.xlu0 %v1427
    %v1429 = vpop.xlane.xlu0 %1428
    %v1430 = vsel %vm1414, %v1317, -inf
    %1431 = vmax.xlane.f32.xlu0 %v1430
    %v1432 = vpop.xlane.xlu0 %1431
    %v1433 = vsel %vm1414, %v1363, -inf
    %1434 = vmax.xlane.f32.xlu0 %v1433
    %v1435 = vpop.xlane.xlu0 %1434
    %v1436 = vsel %vm1414, %v1409, -inf
    %1437 = vmax.xlane.f32.xlu0 %v1436
    %v1438 = vpop.xlane.xlu0 %1437
    %v1439 = vsub.f32 %v1087, %v1417
    %v1440 = vsub.f32 %v1133, %v1420
    %v1441 = vsub.f32 %v1179, %v1423
    %v1442 = vsub.f32 %v1225, %v1426
    %v1443 = vsub.f32 %v1271, %v1429
    %v1444 = vsub.f32 %v1317, %v1432
    %v1445 = vsub.f32 %v1363, %v1435
    %v1446 = vsub.f32 %v1409, %v1438
    %v1447 = vmul.f32 %v1439, 1.442695
    %v1448 = vpow.pop %v1447
    %v1449 = vmul.f32 %v1440, 1.442695
    %v1450 = vpow.pop %v1449
    %v1451 = vmul.f32 %v1441, 1.442695
    %v1452 = vpow.pop %v1451
    %v1453 = vmul.f32 %v1442, 1.442695
    %v1454 = vpow.pop %v1453
    %v1455 = vmul.f32 %v1443, 1.442695
    %v1456 = vpow.pop %v1455
    %v1457 = vmul.f32 %v1444, 1.442695
    %v1458 = vpow.pop %v1457
    %v1459 = vmul.f32 %v1445, 1.442695
    %v1460 = vpow.pop %v1459
    %v1461 = vmul.f32 %v1446, 1.442695
    %v1462 = vpow.pop %v1461
    %v1463 = vsel %vm1414, %v1448, 0.0
    %1464 = vadd.xlane.f32.xlu0 %v1463
    %v1465 = vpop.xlane.xlu0 %1464
    %v1466 = vsel %vm1414, %v1450, 0.0
    %1467 = vadd.xlane.f32.xlu0 %v1466
    %v1468 = vpop.xlane.xlu0 %1467
    %v1469 = vsel %vm1414, %v1452, 0.0
    %1470 = vadd.xlane.f32.xlu0 %v1469
    %v1471 = vpop.xlane.xlu0 %1470
    %v1472 = vsel %vm1414, %v1454, 0.0
    %1473 = vadd.xlane.f32.xlu0 %v1472
    %v1474 = vpop.xlane.xlu0 %1473
    %v1475 = vsel %vm1414, %v1456, 0.0
    %1476 = vadd.xlane.f32.xlu0 %v1475
    %v1477 = vpop.xlane.xlu0 %1476
    %v1478 = vsel %vm1414, %v1458, 0.0
    %1479 = vadd.xlane.f32.xlu0 %v1478
    %v1480 = vpop.xlane.xlu0 %1479
    %v1481 = vsel %vm1414, %v1460, 0.0
    %1482 = vadd.xlane.f32.xlu0 %v1481
    %v1483 = vpop.xlane.xlu0 %1482
    %v1484 = vsel %vm1414, %v1462, 0.0
    %1485 = vadd.xlane.f32.xlu0 %v1484
    %v1486 = vpop.xlane.xlu0 %1485
    %v1487 = vrcp.pop %v1465
    %v1488 = vrcp.pop %v1468
    %v1489 = vrcp.pop %v1471
    %v1490 = vrcp.pop %v1474
    %v1491 = vrcp.pop %v1477
    %v1492 = vrcp.pop %v1480
    %v1493 = vrcp.pop %v1483
    %v1494 = vrcp.pop %v1486
    %v1495 = vmul.f32 %v1448, %v1487
    %v1496 = vmul.f32 %v1450, %v1488
    %v1497 = vmul.f32 %v1452, %v1489
    %v1498 = vmul.f32 %v1454, %v1490
    %v1499 = vmul.f32 %v1456, %v1491
    %v1500 = vmul.f32 %v1458, %v1492
    %v1501 = vmul.f32 %v1460, %v1493
    %v1502 = vmul.f32 %v1462, %v1494
    %v1503 = vpack.c.bf16 %v1495, %v1495
    %v1504 = vpack.c.bf16 %v1496, %v1496
    %v1505 = vpack.c.bf16 %v1497, %v1497
    %v1506 = vpack.c.bf16 %v1498, %v1498
    %v1507 = vpack.c.bf16 %v1499, %v1499
    %v1508 = vpack.c.bf16 %v1500, %v1500
    %v1509 = vpack.c.bf16 %v1501, %v1501
    %v1510 = vpack.c.bf16 %v1502, %v1502
    %v1512 = vsel %vm1414, %v1503, 0
    %vm1514 = vcmask 1043456
    %v1516 = vsel %vm1514, %v1031, 0
    %1518 = vmatprep.subr.bf16.mxu0 0
    %1519 = vmatpush1.bf16.msra.mxu0 %v1516
    %1520 = vmatprep.subr.bf16.mxu0 0
    %1521 = vmatpush1.bf16.msra.mxu0 0
    %1522 = vmatprep.subr.bf16.mxu0 0
    %1523 = vmatpush1.bf16.msra.mxu0 0
    %1524 = vmatprep.subr.bf16.mxu0 0
    %1525 = vmatpush1.bf16.msra.mxu0 0
    %1526 = vmatprep.subr.bf16.mxu0 0
    %1527 = vmatpush1.bf16.msra.mxu0 0
    %1528 = vmatprep.subr.bf16.mxu0 0
    %1529 = vmatpush1.bf16.msra.mxu0 0
    %1530 = vmatprep.subr.bf16.mxu0 0
    %1531 = vmatpush1.bf16.msra.mxu0 0
    %1532 = vmatprep.subr.bf16.mxu0 0
    %1533 = vmatpush1.bf16.msra.mxu0 0
    %1534 = vmatprep.subr.bf16.mxu0 0
    %1535 = vmatpush1.bf16.msra.mxu0 0
    %1536 = vmatprep.subr.bf16.mxu0 0
    %1537 = vmatpush1.bf16.msra.mxu0 0
    %1538 = vmatprep.subr.bf16.mxu0 0
    %1539 = vmatpush1.bf16.msra.mxu0 0
    %1540 = vmatprep.subr.bf16.mxu0 0
    %1541 = vmatpush1.bf16.msra.mxu0 0
    %1542 = vmatprep.subr.bf16.mxu0 0
    %1543 = vmatpush1.bf16.msra.mxu0 0
    %1544 = vmatprep.subr.bf16.mxu0 0
    %1545 = vmatpush1.bf16.msra.mxu0 0
    %1546 = vmatprep.subr.bf16.mxu0 0
    %1547 = vmatpush1.bf16.msra.mxu0 0
    %1548 = vmatprep.subr.bf16.mxu0 0
    %1549 = vmatpush1.bf16.msra.mxu0 0
    %1550 = vmatprep.mubr.bf16.mxu0 0
    %1551 = vmatmul.mubr.bf16.gmra.mrb[0].mxu0 %v1512
    %v1552 = vpop.f32.mrb[0].mxu0
    %v1553 = vadd.f32 0.0, %v1552
    %v1554 = vpop.f32.mrb[0].mxu0
    %v1555 = vpop.f32.mrb[0].mxu0
    %v1556 = vpop.f32.mrb[0].mxu0
    %1557 = vdwg.mxu0
    %v1559 = vsel %vm1414, %v1504, 0
    %v1562 = vsel %vm1514, %v1032, 0
    %1564 = vmatprep.subr.bf16.mxu0 0
    %1565 = vmatpush1.bf16.msra.mxu0 %v1562
    %1566 = vmatprep.subr.bf16.mxu0 0
    %1567 = vmatpush1.bf16.msra.mxu0 0
    %1568 = vmatprep.subr.bf16.mxu0 0
    %1569 = vmatpush1.bf16.msra.mxu0 0
    %1570 = vmatprep.subr.bf16.mxu0 0
    %1571 = vmatpush1.bf16.msra.mxu0 0
    %1572 = vmatprep.subr.bf16.mxu0 0
    %1573 = vmatpush1.bf16.msra.mxu0 0
    %1574 = vmatprep.subr.bf16.mxu0 0
    %1575 = vmatpush1.bf16.msra.mxu0 0
    %1576 = vmatprep.subr.bf16.mxu0 0
    %1577 = vmatpush1.bf16.msra.mxu0 0
    %1578 = vmatprep.subr.bf16.mxu0 0
    %1579 = vmatpush1.bf16.msra.mxu0 0
    %1580 = vmatprep.subr.bf16.mxu0 0
    %1581 = vmatpush1.bf16.msra.mxu0 0
    %1582 = vmatprep.subr.bf16.mxu0 0
    %1583 = vmatpush1.bf16.msra.mxu0 0
    %1584 = vmatprep.subr.bf16.mxu0 0
    %1585 = vmatpush1.bf16.msra.mxu0 0
    %1586 = vmatprep.subr.bf16.mxu0 0
    %1587 = vmatpush1.bf16.msra.mxu0 0
    %1588 = vmatprep.subr.bf16.mxu0 0
    %1589 = vmatpush1.bf16.msra.mxu0 0
    %1590 = vmatprep.subr.bf16.mxu0 0
    %1591 = vmatpush1.bf16.msra.mxu0 0
    %1592 = vmatprep.subr.bf16.mxu0 0
    %1593 = vmatpush1.bf16.msra.mxu0 0
    %1594 = vmatprep.subr.bf16.mxu0 0
    %1595 = vmatpush1.bf16.msra.mxu0 0
    %1596 = vmatprep.mubr.bf16.mxu0 0
    %1597 = vmatmul.mubr.bf16.gmra.mrb[0].mxu0 %v1559
    %v1598 = vpop.f32.mrb[0].mxu0
    %v1599 = vadd.f32 0.0, %v1598
    %v1600 = vpop.f32.mrb[0].mxu0
    %v1601 = vpop.f32.mrb[0].mxu0
    %v1602 = vpop.f32.mrb[0].mxu0
    %1603 = vdwg.mxu0
    %v1605 = vsel %vm1414, %v1505, 0
    %v1608 = vsel %vm1514, %v1033, 0
    %1610 = vmatprep.subr.bf16.mxu0 0
    %1611 = vmatpush1.bf16.msra.mxu0 %v1608
    %1612 = vmatprep.subr.bf16.mxu0 0
    %1613 = vmatpush1.bf16.msra.mxu0 0
    %1614 = vmatprep.subr.bf16.mxu0 0
    %1615 = vmatpush1.bf16.msra.mxu0 0
    %1616 = vmatprep.subr.bf16.mxu0 0
    %1617 = vmatpush1.bf16.msra.mxu0 0
    %1618 = vmatprep.subr.bf16.mxu0 0
    %1619 = vmatpush1.bf16.msra.mxu0 0
    %1620 = vmatprep.subr.bf16.mxu0 0
    %1621 = vmatpush1.bf16.msra.mxu0 0
    %1622 = vmatprep.subr.bf16.mxu0 0
    %1623 = vmatpush1.bf16.msra.mxu0 0
    %1624 = vmatprep.subr.bf16.mxu0 0
    %1625 = vmatpush1.bf16.msra.mxu0 0
    %1626 = vmatprep.subr.bf16.mxu0 0
    %1627 = vmatpush1.bf16.msra.mxu0 0
    %1628 = vmatprep.subr.bf16.mxu0 0
    %1629 = vmatpush1.bf16.msra.mxu0 0
    %1630 = vmatprep.subr.bf16.mxu0 0
    %1631 = vmatpush1.bf16.msra.mxu0 0
    %1632 = vmatprep.subr.bf16.mxu0 0
    %1633 = vmatpush1.bf16.msra.mxu0 0
    %1634 = vmatprep.subr.bf16.mxu0 0
    %1635 = vmatpush1.bf16.msra.mxu0 0
    %1636 = vmatprep.subr.bf16.mxu0 0
    %1637 = vmatpush1.bf16.msra.mxu0 0
    %1638 = vmatprep.subr.bf16.mxu0 0
    %1639 = vmatpush1.bf16.msra.mxu0 0
    %1640 = vmatprep.subr.bf16.mxu0 0
    %1641 = vmatpush1.bf16.msra.mxu0 0
    %1642 = vmatprep.mubr.bf16.mxu0 0
    %1643 = vmatmul.mubr.bf16.gmra.mrb[0].mxu0 %v1605
    %v1644 = vpop.f32.mrb[0].mxu0
    %v1645 = vadd.f32 0.0, %v1644
    %v1646 = vpop.f32.mrb[0].mxu0
    %v1647 = vpop.f32.mrb[0].mxu0
    %v1648 = vpop.f32.mrb[0].mxu0
    %1649 = vdwg.mxu0
    %v1651 = vsel %vm1414, %v1506, 0
    %v1654 = vsel %vm1514, %v1034, 0
    %1656 = vmatprep.subr.bf16.mxu0 0
    %1657 = vmatpush1.bf16.msra.mxu0 %v1654
    %1658 = vmatprep.subr.bf16.mxu0 0
    %1659 = vmatpush1.bf16.msra.mxu0 0
    %1660 = vmatprep.subr.bf16.mxu0 0
    %1661 = vmatpush1.bf16.msra.mxu0 0
    %1662 = vmatprep.subr.bf16.mxu0 0
    %1663 = vmatpush1.bf16.msra.mxu0 0
    %1664 = vmatprep.subr.bf16.mxu0 0
    %1665 = vmatpush1.bf16.msra.mxu0 0
    %1666 = vmatprep.subr.bf16.mxu0 0
    %1667 = vmatpush1.bf16.msra.mxu0 0
    %1668 = vmatprep.subr.bf16.mxu0 0
    %1669 = vmatpush1.bf16.msra.mxu0 0
    %1670 = vmatprep.subr.bf16.mxu0 0
    %1671 = vmatpush1.bf16.msra.mxu0 0
    %1672 = vmatprep.subr.bf16.mxu0 0
    %1673 = vmatpush1.bf16.msra.mxu0 0
    %1674 = vmatprep.subr.bf16.mxu0 0
    %1675 = vmatpush1.bf16.msra.mxu0 0
    %1676 = vmatprep.subr.bf16.mxu0 0
    %1677 = vmatpush1.bf16.msra.mxu0 0
    %1678 = vmatprep.subr.bf16.mxu0 0
    %1679 = vmatpush1.bf16.msra.mxu0 0
    %1680 = vmatprep.subr.bf16.mxu0 0
    %1681 = vmatpush1.bf16.msra.mxu0 0
    %1682 = vmatprep.subr.bf16.mxu0 0
    %1683 = vmatpush1.bf16.msra.mxu0 0
    %1684 = vmatprep.subr.bf16.mxu0 0
    %1685 = vmatpush1.bf16.msra.mxu0 0
    %1686 = vmatprep.subr.bf16.mxu0 0
    %1687 = vmatpush1.bf16.msra.mxu0 0
    %1688 = vmatprep.mubr.bf16.mxu0 0
    %1689 = vmatmul.mubr.bf16.gmra.mrb[0].mxu0 %v1651
    %v1690 = vpop.f32.mrb[0].mxu0
    %v1691 = vadd.f32 0.0, %v1690
    %v1692 = vpop.f32.mrb[0].mxu0
    %v1693 = vpop.f32.mrb[0].mxu0
    %v1694 = vpop.f32.mrb[0].mxu0
    %1695 = vdwg.mxu0
    %v1697 = vsel %vm1414, %v1507, 0
    %v1700 = vsel %vm1514, %v1035, 0
    %1702 = vmatprep.subr.bf16.mxu0 0
    %1703 = vmatpush1.bf16.msra.mxu0 %v1700
    %1704 = vmatprep.subr.bf16.mxu0 0
    %1705 = vmatpush1.bf16.msra.mxu0 0
    %1706 = vmatprep.subr.bf16.mxu0 0
    %1707 = vmatpush1.bf16.msra.mxu0 0
    %1708 = vmatprep.subr.bf16.mxu0 0
    %1709 = vmatpush1.bf16.msra.mxu0 0
    %1710 = vmatprep.subr.bf16.mxu0 0
    %1711 = vmatpush1.bf16.msra.mxu0 0
    %1712 = vmatprep.subr.bf16.mxu0 0
    %1713 = vmatpush1.bf16.msra.mxu0 0
    %1714 = vmatprep.subr.bf16.mxu0 0
    %1715 = vmatpush1.bf16.msra.mxu0 0
    %1716 = vmatprep.subr.bf16.mxu0 0
    %1717 = vmatpush1.bf16.msra.mxu0 0
    %1718 = vmatprep.subr.bf16.mxu0 0
    %1719 = vmatpush1.bf16.msra.mxu0 0
    %1720 = vmatprep.subr.bf16.mxu0 0
    %1721 = vmatpush1.bf16.msra.mxu0 0
    %1722 = vmatprep.subr.bf16.mxu0 0
    %1723 = vmatpush1.bf16.msra.mxu0 0
    %1724 = vmatprep.subr.bf16.mxu0 0
    %1725 = vmatpush1.bf16.msra.mxu0 0
    %1726 = vmatprep.subr.bf16.mxu0 0
    %1727 = vmatpush1.bf16.msra.mxu0 0
    %1728 = vmatprep.subr.bf16.mxu0 0
    %1729 = vmatpush1.bf16.msra.mxu0 0
    %1730 = vmatprep.subr.bf16.mxu0 0
    %1731 = vmatpush1.bf16.msra.mxu0 0
    %1732 = vmatprep.subr.bf16.mxu0 0
    %1733 = vmatpush1.bf16.msra.mxu0 0
    %1734 = vmatprep.mubr.bf16.mxu0 0
    %1735 = vmatmul.mubr.bf16.gmra.mrb[0].mxu0 %v1697
    %v1736 = vpop.f32.mrb[0].mxu0
    %v1737 = vadd.f32 0.0, %v1736
    %v1738 = vpop.f32.mrb[0].mxu0
    %v1739 = vpop.f32.mrb[0].mxu0
    %v1740 = vpop.f32.mrb[0].mxu0
    %1741 = vdwg.mxu0
    %v1743 = vsel %vm1414, %v1508, 0
    %v1746 = vsel %vm1514, %v1036, 0
    %1748 = vmatprep.subr.bf16.mxu0 0
    %1749 = vmatpush1.bf16.msra.mxu0 %v1746
    %1750 = vmatprep.subr.bf16.mxu0 0
    %1751 = vmatpush1.bf16.msra.mxu0 0
    %1752 = vmatprep.subr.bf16.mxu0 0
    %1753 = vmatpush1.bf16.msra.mxu0 0
    %1754 = vmatprep.subr.bf16.mxu0 0
    %1755 = vmatpush1.bf16.msra.mxu0 0
    %1756 = vmatprep.subr.bf16.mxu0 0
    %1757 = vmatpush1.bf16.msra.mxu0 0
    %1758 = vmatprep.subr.bf16.mxu0 0
    %1759 = vmatpush1.bf16.msra.mxu0 0
    %1760 = vmatprep.subr.bf16.mxu0 0
    %1761 = vmatpush1.bf16.msra.mxu0 0
    %1762 = vmatprep.subr.bf16.mxu0 0
    %1763 = vmatpush1.bf16.msra.mxu0 0
    %1764 = vmatprep.subr.bf16.mxu0 0
    %1765 = vmatpush1.bf16.msra.mxu0 0
    %1766 = vmatprep.subr.bf16.mxu0 0
    %1767 = vmatpush1.bf16.msra.mxu0 0
    %1768 = vmatprep.subr.bf16.mxu0 0
    %1769 = vmatpush1.bf16.msra.mxu0 0
    %1770 = vmatprep.subr.bf16.mxu0 0
    %1771 = vmatpush1.bf16.msra.mxu0 0
    %1772 = vmatprep.subr.bf16.mxu0 0
    %1773 = vmatpush1.bf16.msra.mxu0 0
    %1774 = vmatprep.subr.bf16.mxu0 0
    %1775 = vmatpush1.bf16.msra.mxu0 0
    %1776 = vmatprep.subr.bf16.mxu0 0
    %1777 = vmatpush1.bf16.msra.mxu0 0
    %1778 = vmatprep.subr.bf16.mxu0 0
    %1779 = vmatpush1.bf16.msra.mxu0 0
    %1780 = vmatprep.mubr.bf16.mxu0 0
    %1781 = vmatmul.mubr.bf16.gmra.mrb[0].mxu0 %v1743
    %v1782 = vpop.f32.mrb[0].mxu0
    %v1783 = vadd.f32 0.0, %v1782
    %v1784 = vpop.f32.mrb[0].mxu0
    %v1785 = vpop.f32.mrb[0].mxu0
    %v1786 = vpop.f32.mrb[0].mxu0
    %1787 = vdwg.mxu0
    %v1789 = vsel %vm1414, %v1509, 0
    %v1792 = vsel %vm1514, %v1037, 0
    %1794 = vmatprep.subr.bf16.mxu0 0
    %1795 = vmatpush1.bf16.msra.mxu0 %v1792
    %1796 = vmatprep.subr.bf16.mxu0 0
    %1797 = vmatpush1.bf16.msra.mxu0 0
    %1798 = vmatprep.subr.bf16.mxu0 0
    %1799 = vmatpush1.bf16.msra.mxu0 0
    %1800 = vmatprep.subr.bf16.mxu0 0
    %1801 = vmatpush1.bf16.msra.mxu0 0
    %1802 = vmatprep.subr.bf16.mxu0 0
    %1803 = vmatpush1.bf16.msra.mxu0 0
    %1804 = vmatprep.subr.bf16.mxu0 0
    %1805 = vmatpush1.bf16.msra.mxu0 0
    %1806 = vmatprep.subr.bf16.mxu0 0
    %1807 = vmatpush1.bf16.msra.mxu0 0
    %1808 = vmatprep.subr.bf16.mxu0 0
    %1809 = vmatpush1.bf16.msra.mxu0 0
    %1810 = vmatprep.subr.bf16.mxu0 0
    %1811 = vmatpush1.bf16.msra.mxu0 0
    %1812 = vmatprep.subr.bf16.mxu0 0
    %1813 = vmatpush1.bf16.msra.mxu0 0
    %1814 = vmatprep.subr.bf16.mxu0 0
    %1815 = vmatpush1.bf16.msra.mxu0 0
    %1816 = vmatprep.subr.bf16.mxu0 0
    %1817 = vmatpush1.bf16.msra.mxu0 0
    %1818 = vmatprep.subr.bf16.mxu0 0
    %1819 = vmatpush1.bf16.msra.mxu0 0
    %1820 = vmatprep.subr.bf16.mxu0 0
    %1821 = vmatpush1.bf16.msra.mxu0 0
    %1822 = vmatprep.subr.bf16.mxu0 0
    %1823 = vmatpush1.bf16.msra.mxu0 0
    %1824 = vmatprep.subr.bf16.mxu0 0
    %1825 = vmatpush1.bf16.msra.mxu0 0
    %1826 = vmatprep.mubr.bf16.mxu0 0
    %1827 = vmatmul.mubr.bf16.gmra.mrb[0].mxu0 %v1789
    %v1828 = vpop.f32.mrb[0].mxu0
    %v1829 = vadd.f32 0.0, %v1828
    %v1830 = vpop.f32.mrb[0].mxu0
    %v1831 = vpop.f32.mrb[0].mxu0
    %v1832 = vpop.f32.mrb[0].mxu0
    %1833 = vdwg.mxu0
    %v1835 = vsel %vm1414, %v1510, 0
    %v1838 = vsel %vm1514, %v1038, 0
    %1840 = vmatprep.subr.bf16.mxu0 0
    %1841 = vmatpush1.bf16.msra.mxu0 %v1838
    %1842 = vmatprep.subr.bf16.mxu0 0
    %1843 = vmatpush1.bf16.msra.mxu0 0
    %1844 = vmatprep.subr.bf16.mxu0 0
    %1845 = vmatpush1.bf16.msra.mxu0 0
    %1846 = vmatprep.subr.bf16.mxu0 0
    %1847 = vmatpush1.bf16.msra.mxu0 0
    %1848 = vmatprep.subr.bf16.mxu0 0
    %1849 = vmatpush1.bf16.msra.mxu0 0
    %1850 = vmatprep.subr.bf16.mxu0 0
    %1851 = vmatpush1.bf16.msra.mxu0 0
    %1852 = vmatprep.subr.bf16.mxu0 0
    %1853 = vmatpush1.bf16.msra.mxu0 0
    %1854 = vmatprep.subr.bf16.mxu0 0
    %1855 = vmatpush1.bf16.msra.mxu0 0
    %1856 = vmatprep.subr.bf16.mxu0 0
    %1857 = vmatpush1.bf16.msra.mxu0 0
    %1858 = vmatprep.subr.bf16.mxu0 0
    %1859 = vmatpush1.bf16.msra.mxu0 0
    %1860 = vmatprep.subr.bf16.mxu0 0
    %1861 = vmatpush1.bf16.msra.mxu0 0
    %1862 = vmatprep.subr.bf16.mxu0 0
    %1863 = vmatpush1.bf16.msra.mxu0 0
    %1864 = vmatprep.subr.bf16.mxu0 0
    %1865 = vmatpush1.bf16.msra.mxu0 0
    %1866 = vmatprep.subr.bf16.mxu0 0
    %1867 = vmatpush1.bf16.msra.mxu0 0
    %1868 = vmatprep.subr.bf16.mxu0 0
    %1869 = vmatpush1.bf16.msra.mxu0 0
    %1870 = vmatprep.subr.bf16.mxu0 0
    %1871 = vmatpush1.bf16.msra.mxu0 0
    %1872 = vmatprep.mubr.bf16.mxu0 0
    %1873 = vmatmul.mubr.bf16.gmra.mrb[0].mxu0 %v1835
    %v1874 = vpop.f32.mrb[0].mxu0
    %v1875 = vadd.f32 0.0, %v1874
    %v1876 = vpop.f32.mrb[0].mxu0
    %v1877 = vpop.f32.mrb[0].mxu0
    %v1878 = vpop.f32.mrb[0].mxu0
    %1879 = vdwg.mxu0
    %v1880 = vcombine.low %v1553, %v1645
    %v1881 = vcombine.high %v1553, %v1645
    %v1883 = vunpack.c.l.s4 1983009808
    %v1884 = vunpack.c.0.s8 %v1883
    %v1885 = vlaneseq
    %v1886 = vshrl.u32 %v1885, 7
    %v1887 = vsub.s32 %v1884, %v1886
    %v1888 = vrot.slane %v1880, %v1887
    %v1890 = vunpack.c.l.s4 1983009808
    %v1891 = vunpack.c.0.s8 %v1890
    %v1892 = vlaneseq
    %v1893 = vshrl.u32 %v1892, 7
    %v1894 = vsub.s32 %v1891, %v1893
    %v1895 = vrot.slane %v1881, %v1894
    %v1896 = vcombine.low %v1599, %v1691
    %v1897 = vcombine.high %v1599, %v1691
    %v1899 = vunpack.c.l.s4 1983009808
    %v1900 = vunpack.c.0.s8 %v1899
    %v1901 = vlaneseq
    %v1902 = vshrl.u32 %v1901, 7
    %v1903 = vsub.s32 %v1900, %v1902
    %v1904 = vrot.slane %v1896, %v1903
    %v1906 = vunpack.c.l.s4 1983009808
    %v1907 = vunpack.c.0.s8 %v1906
    %v1908 = vlaneseq
    %v1909 = vshrl.u32 %v1908, 7
    %v1910 = vsub.s32 %v1907, %v1909
    %v1911 = vrot.slane %v1897, %v1910
    %v1912 = vcombine.low %v1888, %v1904
    %v1913 = vcombine.high %v1888, %v1904
    %v1915 = vunpack.c.l.s4 1934713408
    %v1916 = vunpack.c.0.s8 %v1915
    %v1917 = vlaneseq
    %v1918 = vshrl.u32 %v1917, 7
    %v1919 = vsub.s32 %v1916, %v1918
    %v1920 = vrot.slane %v1912, %v1919
    %v1922 = vunpack.c.l.s4 1934713408
    %v1923 = vunpack.c.0.s8 %v1922
    %v1924 = vlaneseq
    %v1925 = vshrl.u32 %v1924, 7
    %v1926 = vsub.s32 %v1923, %v1925
    %v1927 = vrot.slane %v1913, %v1926
    %v1928 = vcombine.low %v1895, %v1911
    %v1929 = vcombine.high %v1895, %v1911
    %v1931 = vunpack.c.l.s4 1934713408
    %v1932 = vunpack.c.0.s8 %v1931
    %v1933 = vlaneseq
    %v1934 = vshrl.u32 %v1933, 7
    %v1935 = vsub.s32 %v1932, %v1934
    %v1936 = vrot.slane %v1928, %v1935
    %v1938 = vunpack.c.l.s4 1934713408
    %v1939 = vunpack.c.0.s8 %v1938
    %v1940 = vlaneseq
    %v1941 = vshrl.u32 %v1940, 7
    %v1942 = vsub.s32 %v1939, %v1941
    %v1943 = vrot.slane %v1929, %v1942
    %v1944 = vcombine.high %v1920, 0.0
    %v1945 = vcombine.high %v1927, 0.0
    %v1946 = vcombine.high %v1936, 0.0
    %v1947 = vcombine.high %v1943, 0.0
    %v1948 = vcombine.low %v1737, %v1829
    %v1949 = vcombine.high %v1737, %v1829
    %v1951 = vunpack.c.l.s4 1983009808
    %v1952 = vunpack.c.0.s8 %v1951
    %v1953 = vlaneseq
    %v1954 = vshrl.u32 %v1953, 7
    %v1955 = vsub.s32 %v1952, %v1954
    %v1956 = vrot.slane %v1948, %v1955
    %v1958 = vunpack.c.l.s4 1983009808
    %v1959 = vunpack.c.0.s8 %v1958
    %v1960 = vlaneseq
    %v1961 = vshrl.u32 %v1960, 7
    %v1962 = vsub.s32 %v1959, %v1961
    %v1963 = vrot.slane %v1949, %v1962
    %v1964 = vcombine.low %v1783, %v1875
    %v1965 = vcombine.high %v1783, %v1875
    %v1967 = vunpack.c.l.s4 1983009808
    %v1968 = vunpack.c.0.s8 %v1967
    %v1969 = vlaneseq
    %v1970 = vshrl.u32 %v1969, 7
    %v1971 = vsub.s32 %v1968, %v1970
    %v1972 = vrot.slane %v1964, %v1971
    %v1974 = vunpack.c.l.s4 1983009808
    %v1975 = vunpack.c.0.s8 %v1974
    %v1976 = vlaneseq
    %v1977 = vshrl.u32 %v1976, 7
    %v1978 = vsub.s32 %v1975, %v1977
    %v1979 = vrot.slane %v1965, %v1978
    %v1980 = vcombine.low %v1956, %v1972
    %v1981 = vcombine.high %v1956, %v1972
    %v1983 = vunpack.c.l.s4 1934713408
    %v1984 = vunpack.c.0.s8 %v1983
    %v1985 = vlaneseq
    %v1986 = vshrl.u32 %v1985, 7
    %v1987 = vsub.s32 %v1984, %v1986
    %v1988 = vrot.slane %v1980, %v1987
    %v1990 = vunpack.c.l.s4 1934713408
    %v1991 = vunpack.c.0.s8 %v1990
    %v1992 = vlaneseq
    %v1993 = vshrl.u32 %v1992, 7
    %v1994 = vsub.s32 %v1991, %v1993
    %v1995 = vrot.slane %v1981, %v1994
    %v1996 = vcombine.low %v1963, %v1979
    %v1997 = vcombine.high %v1963, %v1979
    %v1999 = vunpack.c.l.s4 1934713408
    %v2000 = vunpack.c.0.s8 %v1999
    %v2001 = vlaneseq
    %v2002 = vshrl.u32 %v2001, 7
    %v2003 = vsub.s32 %v2000, %v2002
    %v2004 = vrot.slane %v1996, %v2003
    %v2006 = vunpack.c.l.s4 1934713408
    %v2007 = vunpack.c.0.s8 %v2006
    %v2008 = vlaneseq
    %v2009 = vshrl.u32 %v2008, 7
    %v2010 = vsub.s32 %v2007, %v2009
    %v2011 = vrot.slane %v1997, %v2010
    %v2012 = vcombine.high %v1988, 0.0
    %v2013 = vcombine.high %v1995, 0.0
    %v2014 = vcombine.high %v2004, 0.0
    %v2015 = vcombine.high %v2011, 0.0
    %v2016 = vcombine.low %v1920, %v1927
    %v2018 = vunpack.c.l.s4 1983009808
    %v2019 = vunpack.c.0.s8 %v2018
    %v2020 = vlaneseq
    %v2021 = vshrl.u32 %v2020, 7
    %v2022 = vsub.s32 %v2019, %v2021
    %v2023 = vrot.slane %v2016, %v2022
    %v2024 = vcombine.low %v1944, %v1945
    %v2026 = vunpack.c.l.s4 1983009808
    %v2027 = vunpack.c.0.s8 %v2026
    %v2028 = vlaneseq
    %v2029 = vshrl.u32 %v2028, 7
    %v2030 = vsub.s32 %v2027, %v2029
    %v2031 = vrot.slane %v2024, %v2030
    %v2032 = vcombine.low %v1936, %v1943
    %v2034 = vunpack.c.l.s4 1983009808
    %v2035 = vunpack.c.0.s8 %v2034
    %v2036 = vlaneseq
    %v2037 = vshrl.u32 %v2036, 7
    %v2038 = vsub.s32 %v2035, %v2037
    %v2039 = vrot.slane %v2032, %v2038
    %v2040 = vcombine.low %v1946, %v1947
    %v2042 = vunpack.c.l.s4 1983009808
    %v2043 = vunpack.c.0.s8 %v2042
    %v2044 = vlaneseq
    %v2045 = vshrl.u32 %v2044, 7
    %v2046 = vsub.s32 %v2043, %v2045
    %v2047 = vrot.slane %v2040, %v2046
    %v2048 = vcombine.low %v2023, %v2031
    %v2049 = vcombine.high %v2023, %v2031
    %v2051 = vunpack.c.l.s4 1934713408
    %v2052 = vunpack.c.0.s8 %v2051
    %v2053 = vlaneseq
    %v2054 = vshrl.u32 %v2053, 7
    %v2055 = vsub.s32 %v2052, %v2054
    %v2056 = vrot.slane %v2048, %v2055
    %v2058 = vunpack.c.l.s4 1934713408
    %v2059 = vunpack.c.0.s8 %v2058
    %v2060 = vlaneseq
    %v2061 = vshrl.u32 %v2060, 7
    %v2062 = vsub.s32 %v2059, %v2061
    %v2063 = vrot.slane %v2049, %v2062
    %v2064 = vcombine.low %v2039, %v2047
    %v2065 = vcombine.high %v2039, %v2047
    %v2067 = vunpack.c.l.s4 1934713408
    %v2068 = vunpack.c.0.s8 %v2067
    %v2069 = vlaneseq
    %v2070 = vshrl.u32 %v2069, 7
    %v2071 = vsub.s32 %v2068, %v2070
    %v2072 = vrot.slane %v2064, %v2071
    %v2074 = vunpack.c.l.s4 1934713408
    %v2075 = vunpack.c.0.s8 %v2074
    %v2076 = vlaneseq
    %v2077 = vshrl.u32 %v2076, 7
    %v2078 = vsub.s32 %v2075, %v2077
    %v2079 = vrot.slane %v2065, %v2078
    %v2080 = vcombine.low %v2056, %v2072
    %v2081 = vcombine.high %v2056, %v2072
    %v2082 = vcombine.low %v2063, %v2079
    %v2083 = vcombine.high %v2063, %v2079
    %v2084 = vcombine.low %v1988, %v1995
    %v2086 = vunpack.c.l.s4 1983009808
    %v2087 = vunpack.c.0.s8 %v2086
    %v2088 = vlaneseq
    %v2089 = vshrl.u32 %v2088, 7
    %v2090 = vsub.s32 %v2087, %v2089
    %v2091 = vrot.slane %v2084, %v2090
    %v2092 = vcombine.low %v2012, %v2013
    %v2094 = vunpack.c.l.s4 1983009808
    %v2095 = vunpack.c.0.s8 %v2094
    %v2096 = vlaneseq
    %v2097 = vshrl.u32 %v2096, 7
    %v2098 = vsub.s32 %v2095, %v2097
    %v2099 = vrot.slane %v2092, %v2098
    %v2100 = vcombine.low %v2004, %v2011
    %v2102 = vunpack.c.l.s4 1983009808
    %v2103 = vunpack.c.0.s8 %v2102
    %v2104 = vlaneseq
    %v2105 = vshrl.u32 %v2104, 7
    %v2106 = vsub.s32 %v2103, %v2105
    %v2107 = vrot.slane %v2100, %v2106
    %v2108 = vcombine.low %v2014, %v2015
    %v2110 = vunpack.c.l.s4 1983009808
    %v2111 = vunpack.c.0.s8 %v2110
    %v2112 = vlaneseq
    %v2113 = vshrl.u32 %v2112, 7
    %v2114 = vsub.s32 %v2111, %v2113
    %v2115 = vrot.slane %v2108, %v2114
    %v2116 = vcombine.low %v2091, %v2099
    %v2117 = vcombine.high %v2091, %v2099
    %v2119 = vunpack.c.l.s4 1934713408
    %v2120 = vunpack.c.0.s8 %v2119
    %v2121 = vlaneseq
    %v2122 = vshrl.u32 %v2121, 7
    %v2123 = vsub.s32 %v2120, %v2122
    %v2124 = vrot.slane %v2116, %v2123
    %v2126 = vunpack.c.l.s4 1934713408
    %v2127 = vunpack.c.0.s8 %v2126
    %v2128 = vlaneseq
    %v2129 = vshrl.u32 %v2128, 7
    %v2130 = vsub.s32 %v2127, %v2129
    %v2131 = vrot.slane %v2117, %v2130
    %v2132 = vcombine.low %v2107, %v2115
    %v2133 = vcombine.high %v2107, %v2115
    %v2135 = vunpack.c.l.s4 1934713408
    %v2136 = vunpack.c.0.s8 %v2135
    %v2137 = vlaneseq
    %v2138 = vshrl.u32 %v2137, 7
    %v2139 = vsub.s32 %v2136, %v2138
    %v2140 = vrot.slane %v2132, %v2139
    %v2142 = vunpack.c.l.s4 1934713408
    %v2143 = vunpack.c.0.s8 %v2142
    %v2144 = vlaneseq
    %v2145 = vshrl.u32 %v2144, 7
    %v2146 = vsub.s32 %v2143, %v2145
    %v2147 = vrot.slane %v2133, %v2146
    %v2148 = vcombine.low %v2124, %v2140
    %v2149 = vcombine.high %v2124, %v2140
    %v2150 = vcombine.low %v2131, %v2147
    %v2151 = vcombine.high %v2131, %v2147
    %2154 = vrot.lane.b32.xlu0 %v2081, 16
    %v2155 = vpop.permute.xlu0 %2154
    %2156 = vrot.lane.b32.xlu0 %v2149, 16
    %v2157 = vpop.permute.xlu0 %2156
    %2162 = vrot.lane.b32.xlu0 %v2082, 32
    %v2163 = vpop.permute.xlu0 %2162
    %2164 = vrot.lane.b32.xlu0 %v2150, 32
    %v2165 = vpop.permute.xlu0 %2164
    %2170 = vrot.lane.b32.xlu0 %v2083, 48
    %v2171 = vpop.permute.xlu0 %2170
    %2172 = vrot.lane.b32.xlu0 %v2151, 48
    %v2173 = vpop.permute.xlu0 %2172
    %v2176 = vsel %vm1045, %v2080, %v2155
    %v2177 = vsel %vm1045, %v2148, %v2157
    %v2178 = vsel %vm88, %v2176, %v2163
    %v2179 = vsel %vm88, %v2177, %v2165
    %vm2180 = vcmask 392192
    %v2181 = vsel %vm2180, %v2178, %v2171
    %v2182 = vsel %vm2180, %v2179, %v2173
    %v2183 = vpack.c.bf16 %v2182, %v2181
    %v2184 = vld [vmem:[#allocation7] sm:$0xf]
    %v2185 = vld [vmem:[#allocation7 + $0x4] sm:$0xf]
    %v2186 = vld [vmem:[#allocation7 + $0x8] sm:$0xf]
    %v2187 = vld [vmem:[#allocation7 + $0xc] sm:$0xf]
    %v2188 = vld [vmem:[#allocation7 + $0x10] sm:$0xf]
    %v2189 = vld [vmem:[#allocation7 + $0x14] sm:$0xf]
    %v2190 = vld [vmem:[#allocation7 + $0x18] sm:$0xf]
    %v2191 = vld [vmem:[#allocation7 + $0x1c] sm:$0xf]
    %v2200 = vunpack.c.l.b16 %v2184
    %v2201 = vunpack.c.l.b16 %v2185
    %v2202 = vunpack.c.l.b16 %v2186
    %v2203 = vunpack.c.l.b16 %v2187
    %v2204 = vunpack.c.l.b16 %v2188
    %v2205 = vunpack.c.l.b16 %v2189
    %v2206 = vunpack.c.l.b16 %v2190
    %v2207 = vunpack.c.l.b16 %v2191
    %v2208 = vpack.c.b16 %v2201, %v2200
    %v2209 = vpack.c.b16 %v2203, %v2202
    %v2210 = vpack.c.b16 %v2205, %v2204
    %v2211 = vpack.c.b16 %v2207, %v2206
    %vm2216 = vcmask 523264
    %v2218 = vsel %vm2216, %v2183, 0
    %2220 = vmatprep.subr.bf16.mxu0 0
    %2221 = vmatpush1.bf16.msra.mxu0 %v2208
    %2222 = vmatprep.subr.bf16.mxu0 0
    %2223 = vmatpush1.bf16.msra.mxu0 %v2209
    %2224 = vmatprep.subr.bf16.mxu0 0
    %2225 = vmatpush1.bf16.msra.mxu0 %v2210
    %2226 = vmatprep.subr.bf16.mxu0 0
    %2227 = vmatpush1.bf16.msra.mxu0 %v2211
    %2228 = vmatprep.subr.bf16.mxu0 0
    %2229 = vmatpush1.bf16.msra.mxu0 0
    %2230 = vmatprep.subr.bf16.mxu0 0
    %2231 = vmatpush1.bf16.msra.mxu0 0
    %2232 = vmatprep.subr.bf16.mxu0 0
    %2233 = vmatpush1.bf16.msra.mxu0 0
    %2234 = vmatprep.subr.bf16.mxu0 0
    %2235 = vmatpush1.bf16.msra.mxu0 0
    %2236 = vmatprep.subr.bf16.mxu0 0
    %2237 = vmatpush1.bf16.msra.mxu0 0
    %2238 = vmatprep.subr.bf16.mxu0 0
    %2239 = vmatpush1.bf16.msra.mxu0 0
    %2240 = vmatprep.subr.bf16.mxu0 0
    %2241 = vmatpush1.bf16.msra.mxu0 0
    %2242 = vmatprep.subr.bf16.mxu0 0
    %2243 = vmatpush1.bf16.msra.mxu0 0
    %2244 = vmatprep.subr.bf16.mxu0 0
    %2245 = vmatpush1.bf16.msra.mxu0 0
    %2246 = vmatprep.subr.bf16.mxu0 0
    %2247 = vmatpush1.bf16.msra.mxu0 0
    %2248 = vmatprep.subr.bf16.mxu0 0
    %2249 = vmatpush1.bf16.msra.mxu0 0
    %2250 = vmatprep.subr.bf16.mxu0 0
    %2251 = vmatpush1.bf16.msra.mxu0 0
    %2252 = vmatprep.mubr.bf16.mxu0 0
    %2253 = vmatmul.mubr.bf16.gmra.mrb[0].mxu0 %v2218
    %v2254 = vpop.f32.mrb[0].mxu0
    %v2255 = vadd.f32 0.0, %v2254
    %v2256 = vpop.f32.mrb[0].mxu0
    %v2257 = vpop.f32.mrb[0].mxu0
    %v2258 = vadd.f32 0.0, %v2257
    %v2259 = vpop.f32.mrb[0].mxu0
    %2260 = vdwg.mxu0
    %2261 = vst [vmem:[#allocation8] sm:$0xff] %v2255
    %2262 = vst [vmem:[#allocation8 + $0x8] sm:$0xff] %v2258
    // Predicated region
    $region26: #{tpu_custom_call.1} parent=1 // pred_check
      _
    $region27: #{tpu_custom_call.1} parent=1 // pred_check_branch
      %2264 = sbr.rel (0) target = $region29
    $region28: #{tpu_custom_call.1} parent=1 // pred_region
      %s2266 = ssub.s32 256, 256
      %2267 = vsyncadd [#allocation4], %s2266
      %s2268 = sshll.u32 [#allocation8], 4
      %s2269 = int_to_ptr.vmem [resolvable:$true] %s2268
      %2274 = dma.vmem_to_hbm [thread:$0]  %s2269, 256, %s3, [#allocation4], 128, 128, 8
    $region29: #{tpu_custom_call.1} parent=1 // pred_fallthru
      _
    // Predicated region
    $region30: #{tpu_custom_call.1} parent=1 // pred_check
      _
    $region31: #{tpu_custom_call.1} parent=1 // pred_check_branch
      %2276 = sbr.rel (0) target = $region33
    $region32: #{tpu_custom_call.1} parent=1 // pred_region
      %2277 = dma.done [#allocation4], 256
    $region33: #{tpu_custom_call.1} parent=1 // pred_fallthru
      _
    %2278 = vsyncpa [#allocation3], 1
    %2279 = vsyncpa [#allocation6], 1
    %2280 = vsyncpa [#allocation4], 1

</llo_original>
